<compile_context>
chip_gen: v6e
topology: v6e:2x2x1
jax: 0.10.0
libtpu: 0.0.40
codegen_flags: <defaults>
</compile_context>

<pallas_src>
import random
import numpy as np
import jax
import jax.numpy as jnp
from jax.experimental import pallas as pl
from jax.experimental.pallas import tpu as pltpu

_ALPHA = 0.2                          # LeakyReLU negative slope (nn.LeakyReLU(0.2))
_ZERO_MASK = -9000000000000000.0      # matches the PyTorch -9e15 masking constant
_MASK_BIAS = 3.0e38                   # arithmetic mask: (mask-1)*3e38 -> 0 / -3e38 (f32 only!)
_NEG_INIT = -3.0e38                   # accumulator init for masked max
_NEG_THRESH = -1.0e30                 # "never received a real neighbor" threshold


# ----------------------------- hardware-dependent config -----------------------------

def _vmem_capacity_bytes():
    try:
        return int(pltpu.get_tpu_info().vmem_capacity_bytes)
    except Exception:
        return 64 * 1024 * 1024       # conservative (v7x-sized) fallback


_VMEM_CAP = _vmem_capacity_bytes()
_BIG_VMEM = _VMEM_CAP >= 100 * 1024 * 1024          # v5e/v6e (128 MiB) vs v7x (64 MiB)
_VMEM_LIMIT = (96 if _BIG_VMEM else 32) * 1024 * 1024
_MM_TM, _MM_TK, _MM_TN = (256, 1024, 1024) if _BIG_VMEM else (128, 512, 512)
_POOL_TK, _POOL_TN = (1024, 1024) if _BIG_VMEM else (512, 512)
_GAT_TKV = 512 if _BIG_VMEM else 256


# ----------------------------- tiling helpers -----------------------------

def _round_up(x, m):
    return ((x + m - 1) // m) * m


def _tile(n, align, max_tile):
    """Return (padded_n, tile) with tile | padded_n and tile aligned (or == padded_n)."""
    n_pad = _round_up(max(int(n), 1), align)
    if n_pad <= max_tile:
        return n_pad, n_pad
    return _round_up(n_pad, max_tile), max_tile


def _pad2(x, rows, cols):
    r, c = x.shape
    if r == rows and c == cols:
        return x
    return jnp.pad(x, ((0, rows - r), (0, cols - c)))


def _to_bf16_pad(x, rows, cols):
    if x.dtype != jnp.bfloat16:
        x = x.astype(jnp.bfloat16)
    return _pad2(x, rows, cols)


# ----------------------------- Pallas kernels -----------------------------

def _matmul_kernel(a_ref, b_ref, o_ref, acc_ref):
    # Standard K-tiled matmul with f32 VMEM accumulator (bf16 inputs, f32/bf16 out).
    @pl.when(pl.program_id(2) == 0)
    def _():
        acc_ref[...] = jnp.zeros_like(acc_ref)

    acc_ref[...] += jnp.dot(a_ref[...], b_ref[...],
                            preferred_element_type=jnp.float32)

    @pl.when(pl.program_id(2) == pl.num_programs(2) - 1)
    def _():
        o_ref[...] = acc_ref[...].astype(o_ref.dtype)


def _gcn_mean_kernel(mask_ref, nbr_ref, inv_ref, out_ref, acc_ref):
    # out = (mask @ nbr_feats) * inv_count.  inv_count is precomputed on the host, so the
    # kernel carries no per-step count logic (review: counts depend only on (i,k)).
    k = pl.program_id(2)

    @pl.when(k == 0)
    def _():
        acc_ref[...] = jnp.zeros_like(acc_ref)

    acc_ref[...] += jnp.dot(mask_ref[...], nbr_ref[...],
                            preferred_element_type=jnp.float32)

    @pl.when(k == pl.num_programs(2) - 1)
    def _():
        out_ref[...] = acc_ref[...] * inv_ref[...]


def _gcn_max_kernel(mask_ref, nbr_ref, out_ref, acc_ref):
    # Masked max-pool.  Neighbor axis is a grid reduction axis; the per-tile update uses
    # the arithmetic mask trick (review): bias = (mask - 1) * 3e38 in f32, then each
    # neighbor contributes  acc = max(acc, feat_row + bias_col)  -> 2 VALU ops / element.
    k = pl.program_id(2)

    @pl.when(k == 0)
    def _():
        acc_ref[...] = jnp.full(acc_ref.shape, _NEG_INIT, jnp.float32)

    bias = (mask_ref[...].astype(jnp.float32) - 1.0) * _MASK_BIAS      # (tnr, tmn) f32
    feats = nbr_ref[...].astype(jnp.float32)                           # (tmn, td)  f32

    acc = acc_ref[...]
    # TODO(synk): per review, a lax.fori_loop over 8-neighbor sub-blocks would shrink the
    # statically-unrolled code further, but needs either a lane-dynamic slice or an
    # (8,128) in-kernel transpose; the neighbor block is kept at 128 so the static unroll
    # stays small while the output tile is 8x larger than before.
    for j in range(bias.shape[1]):                                     # static unroll (<=128)
        acc = jnp.maximum(acc, feats[j:j + 1, :] + bias[:, j:j + 1])
    acc_ref[...] = acc

    @pl.when(k == pl.num_programs(2) - 1)
    def _():
        acc = acc_ref[...]
        # Rows with no neighbors never receive a real contribution and stay <= threshold.
        out_ref[...] = jnp.where(acc > _NEG_THRESH, acc, 0.0)


def _gat_fused_kernel(mask_ref, e1_ref, e2_ref, hm_ref, o_ref, m_sc, l_sc, acc_sc):
    # Fused GAT attention + aggregation (flash-style online softmax over neighbor tiles).
    # Scores are rank-1: e[i,j] = LeakyReLU(e1[i] + e2[j]) with e1/e2 precomputed by the
    # projection matmul (a1/a2 folded into the weight), masked with -9e15 like the
    # reference.  The (N, M) attention matrix is never materialized in HBM.
    k = pl.program_id(1)

    @pl.when(k == 0)
    def _():
        m_sc[...] = jnp.full(m_sc.shape, _NEG_INIT, jnp.float32)
        l_sc[...] = jnp.zeros_like(l_sc)
        acc_sc[...] = jnp.zeros_like(acc_sc)

    e = e1_ref[...] + e2_ref[...]                          # (tnr, tmn) f32
    e = jnp.where(e > 0.0, e, _ALPHA * e)                  # LeakyReLU(0.2)
    e = jnp.where(mask_ref[...] > 0, e, jnp.float32(_ZERO_MASK))

    m_prev = m_sc[...]
    m_new = jnp.maximum(m_prev, jnp.max(e, axis=1, keepdims=True))
    alpha = jnp.exp(m_prev - m_new)
    p = jnp.exp(e - m_new)
    l_sc[...] = alpha * l_sc[...] + jnp.sum(p, axis=1, keepdims=True)
    acc_sc[...] = alpha * acc_sc[...] + jnp.dot(
        p.astype(hm_ref.dtype), hm_ref[...], preferred_element_type=jnp.float32)
    m_sc[...] = m_new

    @pl.when(k == pl.num_programs(1) - 1)
    def _():
        # Exact division (once per output tile) keeps parity with the f32 reference softmax.
        o_ref[...] = acc_sc[...] / l_sc[...]


# ----------------------------- pallas_call wrappers -----------------------------

def _tiled_matmul(a, b, out_dtype=jnp.float32):
    """f32-accumulated bf16 matmul with a (rows, cols, K) grid and VMEM accumulator."""
    R, K = a.shape
    K2, C = b.shape
    assert K == K2
    Rp, tm = _tile(R, 8, _MM_TM)
    Kp, tk = _tile(K, 128, _MM_TK)
    Cp, tn = _tile(C, 128, _MM_TN)
    a_p = _to_bf16_pad(a, Rp, Kp)
    b_p = _to_bf16_pad(b, Kp, Cp)
    grid = (Rp // tm, Cp // tn, Kp // tk)
    out = pl.pallas_call(
        _matmul_kernel,
        out_shape=jax.ShapeDtypeStruct((Rp, Cp), out_dtype),
        grid_spec=pltpu.PrefetchScalarGridSpec(
            num_scalar_prefetch=0, grid=grid,
            in_specs=[pl.BlockSpec((tm, tk), lambda i, j, k: (i, k)),
                      pl.BlockSpec((tk, tn), lambda i, j, k: (k, j))],
            out_specs=pl.BlockSpec((tm, tn), lambda i, j, k: (i, j)),
            scratch_shapes=[pltpu.VMEM((tm, tn), jnp.float32)]),
        compiler_params=pltpu.CompilerParams(
            dimension_semantics=("parallel", "parallel", "arbitrary"),
            vmem_limit_bytes=_VMEM_LIMIT),
    )(a_p, b_p)
    return out[:R, :C]


def _gcn_mean(mask, nbr_feats, inv_cnt):
    """GCN mean pooling: (mask @ feats) * (1/count), counts precomputed on host."""
    N, M = mask.shape
    D = nbr_feats.shape[1]
    Np, tnr = _tile(N, 8, 128)
    Mp, tmn = _tile(M, 128, _POOL_TK)
    Dp, td = _tile(D, 128, _POOL_TN)
    mask_p = _pad2(mask.astype(jnp.float32), Np, Mp).astype(jnp.bfloat16)
    nbr_p = _to_bf16_pad(nbr_feats, Mp, Dp)
    inv_p = _pad2(inv_cnt.reshape(-1, 1).astype(jnp.float32), Np, 1)
    grid = (Np // tnr, Dp // td, Mp // tmn)
    out = pl.pallas_call(
        _gcn_mean_kernel,
        out_shape=jax.ShapeDtypeStruct((Np, Dp), jnp.float32),
        grid_spec=pltpu.PrefetchScalarGridSpec(
            num_scalar_prefetch=0, grid=grid,
            in_specs=[pl.BlockSpec((tnr, tmn), lambda i, j, k: (i, k)),
                      pl.BlockSpec((tmn, td), lambda i, j, k: (k, j)),
                      pl.BlockSpec((tnr, 1), lambda i, j, k: (i, 0))],
            out_specs=pl.BlockSpec((tnr, td), lambda i, j, k: (i, j)),
            scratch_shapes=[pltpu.VMEM((tnr, td), jnp.float32)]),
        compiler_params=pltpu.CompilerParams(
            dimension_semantics=("parallel", "parallel", "arbitrary"),
            vmem_limit_bytes=_VMEM_LIMIT),
    )(mask_p, nbr_p, inv_p)
    return out[:N, :D]


def _gcn_max(mask, nbr_feats):
    """GCN masked max pooling over a dense 0/1 mask (N, M) and neighbor features (M, D)."""
    N, M = mask.shape
    D = nbr_feats.shape[1]
    Np, tnr = _tile(N, 8, 64)          # (64,128) f32 acc = 8 vregs per grid step
    Mp, tmn = _tile(M, 128, 128)       # bounded neighbor block -> bounded static unroll
    Dp, td = _tile(D, 128, 128)
    mask_p = _pad2(mask.astype(jnp.float32), Np, Mp).astype(jnp.bfloat16)
    nbr_p = _to_bf16_pad(nbr_feats, Mp, Dp)
    grid = (Np // tnr, Dp // td, Mp // tmn)
    out = pl.pallas_call(
        _gcn_max_kernel,
        out_shape=jax.ShapeDtypeStruct((Np, Dp), jnp.float32),
        grid_spec=pltpu.PrefetchScalarGridSpec(
            num_scalar_prefetch=0, grid=grid,
            in_specs=[pl.BlockSpec((tnr, tmn), lambda i, j, k: (i, k)),
                      pl.BlockSpec((tmn, td), lambda i, j, k: (k, j))],
            out_specs=pl.BlockSpec((tnr, td), lambda i, j, k: (i, j)),
            scratch_shapes=[pltpu.VMEM((tnr, td), jnp.float32)]),
        compiler_params=pltpu.CompilerParams(
            dimension_semantics=("parallel", "parallel", "arbitrary"),
            vmem_limit_bytes=_VMEM_LIMIT),
    )(mask_p, nbr_p)
    return out[:N, :D]


def _gat_fused(mask, e1, e2, h_m):
    """Fused GAT attention softmax + aggregation: softmax_j(masked LeakyReLU(e1+e2)) @ h_m."""
    N, M = mask.shape
    D = h_m.shape[1]
    Np, tnr = _tile(N, 8, 128)
    Mp, tmn = _tile(M, 128, _GAT_TKV)
    Dp = _round_up(D, 128)
    # TODO(synk): for very large feature dims (>~8k) add a D grid axis; full D kept resident.
    mask_p = _pad2(mask.astype(jnp.float32), Np, Mp).astype(jnp.bfloat16)
    e1_p = _pad2(e1.reshape(-1, 1).astype(jnp.float32), Np, 1)
    e2_p = _pad2(e2.reshape(1, -1).astype(jnp.float32), 1, Mp)
    hm_p = _to_bf16_pad(h_m, Mp, Dp)
    grid = (Np // tnr, Mp // tmn)
    out = pl.pallas_call(
        _gat_fused_kernel,
        out_shape=jax.ShapeDtypeStruct((Np, Dp), jnp.float32),
        grid_spec=pltpu.PrefetchScalarGridSpec(
            num_scalar_prefetch=0, grid=grid,
            in_specs=[pl.BlockSpec((tnr, tmn), lambda i, k: (i, k)),
                      pl.BlockSpec((tnr, 1), lambda i, k: (i, 0)),
                      pl.BlockSpec((1, tmn), lambda i, k: (0, k)),
                      pl.BlockSpec((tmn, Dp), lambda i, k: (k, 0))],
            out_specs=pl.BlockSpec((tnr, Dp), lambda i, k: (i, 0)),
            scratch_shapes=[pltpu.VMEM((tnr, 1), jnp.float32),
                            pltpu.VMEM((tnr, 1), jnp.float32),
                            pltpu.VMEM((tnr, Dp), jnp.float32)]),
        compiler_params=pltpu.CompilerParams(
            dimension_semantics=("parallel", "arbitrary"),
            vmem_limit_bytes=_VMEM_LIMIT),
    )(mask_p, e1_p, e2_p, hm_p)
    return out[:N, :D]


# --------------------------- Module-equivalent wrapper ---------------------------

class MeanAggregatorPallas:
    """Pallas port of the PyTorch MeanAggregator (GCN / GAT / GIN modes)."""

    def __init__(self, features_fn, features_dim=4096, gcn_style=False, mode='GCN', seed=0):
        self.features_fn = features_fn
        self.gcn_style = gcn_style
        self.mode = mode
        self.in_features = features_dim
        self.out_features = features_dim
        k1, k2 = jax.random.split(jax.random.PRNGKey(seed))
        bw = float(np.sqrt(6.0 / (self.in_features + self.out_features)))   # xavier_uniform_
        self.weight = jax.random.uniform(k1, (self.in_features, self.out_features),
                                         jnp.float32, -bw, bw)
        ba = float(np.sqrt(6.0 / (2 * self.out_features + 1)))
        self.att_weight = jax.random.uniform(k2, (2 * self.out_features, 1),
                                             jnp.float32, -ba, ba)
        # GAT: fold W@a1 / W@a2 as two extra columns of a cached bf16 weight so the
        # attention-score pieces fall out of the single MXU projection pass and the large
        # f32 weight is not re-cast on every forward (review items).
        d = self.out_features
        wa1 = self.weight @ self.att_weight[:d]          # (D, 1)
        wa2 = self.weight @ self.att_weight[d:]          # (D, 1)
        self._w_gat_bf16 = jnp.concatenate([self.weight, wa1, wa2],
                                           axis=1).astype(jnp.bfloat16)     # (D, D+2)

    # Host-side glue: sampling, set union, dense mask construction.
    # TODO(synk): random-set sampling / set union are host-side data-dependent ops with no
    # clean Pallas equivalent; they stay in Python (as in the original nn.Module).
    def _prepare(self, nodes, neighbors, num_sample):
        if num_sample is not None:
            sampled = [set(random.sample(sorted(nbrs), num_sample)) if len(nbrs) >= num_sample
                       else set(nbrs) for nbrs in neighbors]
        else:
            sampled = [set(nbrs) for nbrs in neighbors]
        if self.gcn_style:
            sampled = [nbrs | {nodes[i]} for i, nbrs in enumerate(sampled)]
        all_unique = sorted(set.union(*sampled))
        n2i = {n: i for i, n in enumerate(all_unique)}
        mask = np.zeros((len(sampled), len(all_unique)), dtype=np.float32)
        for i, nbrs in enumerate(sampled):
            for n in nbrs:
                mask[i, n2i[n]] = 1.0
        return mask, all_unique

    def forward(self, nodes, neighbors, num_sample=10, agg_type='max'):
        mask_np, all_unique = self._prepare(nodes, neighbors, num_sample)
        mask = jnp.asarray(mask_np, dtype=jnp.float32)
        node_feats = self.features_fn(jnp.asarray(nodes, dtype=jnp.int32))
        nbr_feats = self.features_fn(jnp.asarray(all_unique, dtype=jnp.int32))
        N = len(nodes)
        d = self.out_features

        if self.mode == 'GAT':
            # Single streaming projection over [W | Wa1 | Wa2]; h emitted in bf16.
            # TODO(synk): node rows only need the e1 column and could skip the full-W pass.
            x_cat = jnp.concatenate([node_feats, nbr_feats], axis=0)
            h_ext = _tiled_matmul(x_cat, self._w_gat_bf16,
                                  out_dtype=jnp.bfloat16)                 # (N+M, D+2) bf16
            h_m = h_ext[N:, :d]                                           # (M, D) bf16
            e1 = h_ext[:N, d].astype(jnp.float32)                         # (N,)
            e2 = h_ext[N:, d + 1].astype(jnp.float32)                     # (M,)
            return _gat_fused(mask, e1, e2, h_m)                          # (N, D) f32
        if self.mode == 'GCN':
            if agg_type == 'mean':
                cnt = mask_np.sum(axis=1, keepdims=True)
                cnt[cnt == 0] = 1.0                                       # parity w/ reference
                inv_cnt = jnp.asarray(1.0 / cnt, dtype=jnp.float32)
                return _gcn_mean(mask, nbr_feats, inv_cnt)
            if agg_type == 'max':
                return _gcn_max(mask, nbr_feats)
            raise ValueError('Unknown agg_type')
        if self.mode == 'GIN':
            return _tiled_matmul(mask, nbr_feats)                         # plain neighbor sum
        raise ValueError('Unknown aggregation mode')


# ------------------------------ NumPy reference ------------------------------

def _ref_forward(mode, agg_type, mask, nf, mf, weight, att_weight):
    mask = np.asarray(mask, np.float32)
    nf = np.asarray(nf, np.float32)
    mf = np.asarray(mf, np.float32)
    if mode == 'GAT':
        w = np.asarray(weight, np.float32)
        a = np.asarray(att_weight, np.float32)
        hn, hm = nf @ w, mf @ w
        d = hn.shape[1]
        e = hn @ a[:d] + (hm @ a[d:]).T
        e = np.where(e > 0, e, _ALPHA * e)
        e = np.where(mask > 0, e, np.float32(_ZERO_MASK))
        e = e - e.max(axis=1, keepdims=True)
        p = np.exp(e)
        att = p / p.sum(axis=1, keepdims=True)
        return att @ hm
    if mode == 'GCN' and agg_type == 'mean':
        cnt = mask.sum(1, keepdims=True)
        cnt[cnt == 0] = 1
        return (mask / cnt) @ mf
    if mode == 'GCN' and agg_type == 'max':
        out = np.zeros((mask.shape[0], mf.shape[1]), np.float32)
        for i in range(mask.shape[0]):
            idx = np.nonzero(mask[i])[0]
            if len(idx):
                out[i] = mf[idx].max(0)
        return out
    return mask @ mf  # GIN


# ------------------------------------ main ------------------------------------

if __name__ == "__main__":
    random.seed(0)
    key = jax.random.PRNGKey(0)
    total_nodes, feat_dim = 24, 128
    feat_table = jax.random.normal(key, (total_nodes, feat_dim), jnp.float32)
    features_fn = lambda idx: feat_table[idx]

    nodes = [0, 1, 2, 3, 4, 5]
    neighbors = [
        {1, 2, 7},
        {0, 3, 8, 9},
        {4, 10, 11, 12},
        {5, 6},
        {2, 13, 14, 15, 16},
        {17, 18, 19},
    ]

    ok = True
    failures = []
    for mode, agg_type in [('GCN', 'max'), ('GCN', 'mean'), ('GAT', 'max'), ('GIN', 'max')]:
        agg = MeanAggregatorPallas(features_fn, features_dim=feat_dim, mode=mode, seed=0)
        out = jax.block_until_ready(
            agg.forward(nodes, neighbors, num_sample=None, agg_type=agg_type))
        # reference (same deterministic mask since num_sample=None)
        mask_np, all_unique = agg._prepare(nodes, neighbors, None)
        nf = np.asarray(feat_table)[np.asarray(nodes)]
        mf = np.asarray(feat_table)[np.asarray(all_unique)]
        ref = _ref_forward(mode, agg_type, mask_np, nf, mf,
                           np.asarray(agg.weight), np.asarray(agg.att_weight))
        if out.shape != (len(nodes), feat_dim):
            ok = False
            failures.append((mode, agg_type, "shape"))
        elif not np.allclose(np.asarray(out), ref, atol=5e-2, rtol=5e-2):
            ok = False
            failures.append((mode, agg_type, "values"))

    if ok:
        print("KERNEL_OK")
    else:
        raise SystemExit(f"MISMATCH: {failures}")
</pallas_src>

<mosaic_0001>
module attributes {stable_mosaic.version = 11 : i64} {
  func.func @_gcn_max_kernel(%arg0: i32, %arg1: i32, %arg2: i32, %arg3: memref<8x128xbf16, #tpu.memory_space<vmem>>, %arg4: memref<128x128xbf16, #tpu.memory_space<vmem>>, %arg5: memref<8x128xf32, #tpu.memory_space<vmem>>, %arg6: memref<8x128xf32, #tpu.memory_space<vmem>>) attributes {dimension_semantics = [#tpu.dimension_semantics<parallel>, #tpu.dimension_semantics<parallel>, #tpu.dimension_semantics<arbitrary>], iteration_bounds = array<i64: 1, 1, 1>, scalar_prefetch = 0 : i64, scratch_operands = 1 : i64, tpu.core_type = #tpu.core_type<tc>, window_params = [{transform_indices = @transform_0, window_bounds = array<i64: 8, 128>}, {transform_indices = @transform_1, window_bounds = array<i64: 128, 128>}, {transform_indices = @transform_2, window_bounds = array<i64: 8, 128>}]} {
    %c0_i32 = arith.constant 0 : i32
    %0 = arith.cmpi eq, %arg2, %c0_i32 : i32
    %1 = arith.extui %0 : i1 to i32
    %c0_i32_0 = arith.constant 0 : i32
    %2 = arith.cmpi ne, %1, %c0_i32_0 : i32
    scf.if %2 {
      %cst_11 = arith.constant -3.000000e+38 : f32
      %784 = vector.broadcast %cst_11 : f32 to vector<8x128xf32>
      %c0_12 = arith.constant 0 : index
      %c0_13 = arith.constant 0 : index
      %785 = vector.load %arg6[%c0_12, %c0_13] : memref<8x128xf32, #tpu.memory_space<vmem>>, vector<8x128xf32>
      tpu.vector_store %arg6[%c0_12, %c0_13], %784 {strides = array<i32>} : memref<8x128xf32, #tpu.memory_space<vmem>>, vector<8x128xf32>,
    } else {
    }
    %c0 = arith.constant 0 : index
    %c0_1 = arith.constant 0 : index
    %3 = vector.load %arg3[%c0, %c0_1] : memref<8x128xbf16, #tpu.memory_space<vmem>>, vector<8x128xbf16>
    %4 = arith.extf %3 : vector<8x128xbf16> to vector<8x128xf32>
    %cst = arith.constant 1.000000e+00 : f32
    %5 = vector.broadcast %cst : f32 to vector<8x128xf32>
    %6 = arith.subf %4, %5 : vector<8x128xf32>
    %cst_2 = arith.constant 3.000000e+38 : f32
    %7 = vector.broadcast %cst_2 : f32 to vector<8x128xf32>
    %8 = arith.mulf %6, %7 : vector<8x128xf32>
    %c0_3 = arith.constant 0 : index
    %c0_4 = arith.constant 0 : index
    %9 = vector.load %arg4[%c0_3, %c0_4] : memref<128x128xbf16, #tpu.memory_space<vmem>>, vector<128x128xbf16>
    %10 = arith.extf %9 : vector<128x128xbf16> to vector<128x128xf32>
    %c0_5 = arith.constant 0 : index
    %c0_6 = arith.constant 0 : index
    %11 = vector.load %arg6[%c0_5, %c0_6] : memref<8x128xf32, #tpu.memory_space<vmem>>, vector<8x128xf32>
    %12 = vector.extract_strided_slice %10 {offsets = [0, 0], sizes = [1, 128], strides = [1, 1]} : vector<128x128xf32> to vector<1x128xf32>
    %13 = vector.extract_strided_slice %8 {offsets = [0, 0], sizes = [8, 1], strides = [1, 1]} : vector<8x128xf32> to vector<8x1xf32>
    %14 = vector.broadcast %12 : vector<1x128xf32> to vector<8x128xf32>
    %15 = vector.broadcast %13 : vector<8x1xf32> to vector<8x128xf32>
    %16 = arith.addf %14, %15 : vector<8x128xf32>
    %17 = arith.maximumf %11, %16 : vector<8x128xf32>
    %18 = vector.extract_strided_slice %10 {offsets = [1, 0], sizes = [1, 128], strides = [1, 1]} : vector<128x128xf32> to vector<1x128xf32>
    %19 = vector.extract_strided_slice %8 {offsets = [0, 1], sizes = [8, 1], strides = [1, 1]} : vector<8x128xf32> to vector<8x1xf32>
    %20 = vector.broadcast %18 : vector<1x128xf32> to vector<8x128xf32>
    %21 = vector.broadcast %19 : vector<8x1xf32> to vector<8x128xf32>
    %22 = arith.addf %20, %21 : vector<8x128xf32>
    %23 = arith.maximumf %17, %22 : vector<8x128xf32>
    %24 = vector.extract_strided_slice %10 {offsets = [2, 0], sizes = [1, 128], strides = [1, 1]} : vector<128x128xf32> to vector<1x128xf32>
    %25 = vector.extract_strided_slice %8 {offsets = [0, 2], sizes = [8, 1], strides = [1, 1]} : vector<8x128xf32> to vector<8x1xf32>
    %26 = vector.broadcast %24 : vector<1x128xf32> to vector<8x128xf32>
    %27 = vector.broadcast %25 : vector<8x1xf32> to vector<8x128xf32>
    %28 = arith.addf %26, %27 : vector<8x128xf32>
    %29 = arith.maximumf %23, %28 : vector<8x128xf32>
    %30 = vector.extract_strided_slice %10 {offsets = [3, 0], sizes = [1, 128], strides = [1, 1]} : vector<128x128xf32> to vector<1x128xf32>
    %31 = vector.extract_strided_slice %8 {offsets = [0, 3], sizes = [8, 1], strides = [1, 1]} : vector<8x128xf32> to vector<8x1xf32>
    %32 = vector.broadcast %30 : vector<1x128xf32> to vector<8x128xf32>
    %33 = vector.broadcast %31 : vector<8x1xf32> to vector<8x128xf32>
    %34 = arith.addf %32, %33 : vector<8x128xf32>
    %35 = arith.maximumf %29, %34 : vector<8x128xf32>
    %36 = vector.extract_strided_slice %10 {offsets = [4, 0], sizes = [1, 128], strides = [1, 1]} : vector<128x128xf32> to vector<1x128xf32>
    %37 = vector.extract_strided_slice %8 {offsets = [0, 4], sizes = [8, 1], strides = [1, 1]} : vector<8x128xf32> to vector<8x1xf32>
    %38 = vector.broadcast %36 : vector<1x128xf32> to vector<8x128xf32>
    %39 = vector.broadcast %37 : vector<8x1xf32> to vector<8x128xf32>
    %40 = arith.addf %38, %39 : vector<8x128xf32>
    %41 = arith.maximumf %35, %40 : vector<8x128xf32>
    %42 = vector.extract_strided_slice %10 {offsets = [5, 0], sizes = [1, 128], strides = [1, 1]} : vector<128x128xf32> to vector<1x128xf32>
    %43 = vector.extract_strided_slice %8 {offsets = [0, 5], sizes = [8, 1], strides = [1, 1]} : vector<8x128xf32> to vector<8x1xf32>
    %44 = vector.broadcast %42 : vector<1x128xf32> to vector<8x128xf32>
    %45 = vector.broadcast %43 : vector<8x1xf32> to vector<8x128xf32>
    %46 = arith.addf %44, %45 : vector<8x128xf32>
    %47 = arith.maximumf %41, %46 : vector<8x128xf32>
    %48 = vector.extract_strided_slice %10 {offsets = [6, 0], sizes = [1, 128], strides = [1, 1]} : vector<128x128xf32> to vector<1x128xf32>
    %49 = vector.extract_strided_slice %8 {offsets = [0, 6], sizes = [8, 1], strides = [1, 1]} : vector<8x128xf32> to vector<8x1xf32>
    %50 = vector.broadcast %48 : vector<1x128xf32> to vector<8x128xf32>
    %51 = vector.broadcast %49 : vector<8x1xf32> to vector<8x128xf32>
    %52 = arith.addf %50, %51 : vector<8x128xf32>
    %53 = arith.maximumf %47, %52 : vector<8x128xf32>
    %54 = vector.extract_strided_slice %10 {offsets = [7, 0], sizes = [1, 128], strides = [1, 1]} : vector<128x128xf32> to vector<1x128xf32>
    %55 = vector.extract_strided_slice %8 {offsets = [0, 7], sizes = [8, 1], strides = [1, 1]} : vector<8x128xf32> to vector<8x1xf32>
    %56 = vector.broadcast %54 : vector<1x128xf32> to vector<8x128xf32>
    %57 = vector.broadcast %55 : vector<8x1xf32> to vector<8x128xf32>
    %58 = arith.addf %56, %57 : vector<8x128xf32>
    %59 = arith.maximumf %53, %58 : vector<8x128xf32>
    %60 = vector.extract_strided_slice %10 {offsets = [8, 0], sizes = [1, 128], strides = [1, 1]} : vector<128x128xf32> to vector<1x128xf32>
    %61 = vector.extract_strided_slice %8 {offsets = [0, 8], sizes = [8, 1], strides = [1, 1]} : vector<8x128xf32> to vector<8x1xf32>
    %62 = vector.broadcast %60 : vector<1x128xf32> to vector<8x128xf32>
    %63 = vector.broadcast %61 : vector<8x1xf32> to vector<8x128xf32>
    %64 = arith.addf %62, %63 : vector<8x128xf32>
    %65 = arith.maximumf %59, %64 : vector<8x128xf32>
    %66 = vector.extract_strided_slice %10 {offsets = [9, 0], sizes = [1, 128], strides = [1, 1]} : vector<128x128xf32> to vector<1x128xf32>
    %67 = vector.extract_strided_slice %8 {offsets = [0, 9], sizes = [8, 1], strides = [1, 1]} : vector<8x128xf32> to vector<8x1xf32>
    %68 = vector.broadcast %66 : vector<1x128xf32> to vector<8x128xf32>
    %69 = vector.broadcast %67 : vector<8x1xf32> to vector<8x128xf32>
    %70 = arith.addf %68, %69 : vector<8x128xf32>
    %71 = arith.maximumf %65, %70 : vector<8x128xf32>
    %72 = vector.extract_strided_slice %10 {offsets = [10, 0], sizes = [1, 128], strides = [1, 1]} : vector<128x128xf32> to vector<1x128xf32>
    %73 = vector.extract_strided_slice %8 {offsets = [0, 10], sizes = [8, 1], strides = [1, 1]} : vector<8x128xf32> to vector<8x1xf32>
    %74 = vector.broadcast %72 : vector<1x128xf32> to vector<8x128xf32>
    %75 = vector.broadcast %73 : vector<8x1xf32> to vector<8x128xf32>
    %76 = arith.addf %74, %75 : vector<8x128xf32>
    %77 = arith.maximumf %71, %76 : vector<8x128xf32>
    %78 = vector.extract_strided_slice %10 {offsets = [11, 0], sizes = [1, 128], strides = [1, 1]} : vector<128x128xf32> to vector<1x128xf32>
    %79 = vector.extract_strided_slice %8 {offsets = [0, 11], sizes = [8, 1], strides = [1, 1]} : vector<8x128xf32> to vector<8x1xf32>
    %80 = vector.broadcast %78 : vector<1x128xf32> to vector<8x128xf32>
    %81 = vector.broadcast %79 : vector<8x1xf32> to vector<8x128xf32>
    %82 = arith.addf %80, %81 : vector<8x128xf32>
    %83 = arith.maximumf %77, %82 : vector<8x128xf32>
    %84 = vector.extract_strided_slice %10 {offsets = [12, 0], sizes = [1, 128], strides = [1, 1]} : vector<128x128xf32> to vector<1x128xf32>
    %85 = vector.extract_strided_slice %8 {offsets = [0, 12], sizes = [8, 1], strides = [1, 1]} : vector<8x128xf32> to vector<8x1xf32>
    %86 = vector.broadcast %84 : vector<1x128xf32> to vector<8x128xf32>
    %87 = vector.broadcast %85 : vector<8x1xf32> to vector<8x128xf32>
    %88 = arith.addf %86, %87 : vector<8x128xf32>
    %89 = arith.maximumf %83, %88 : vector<8x128xf32>
    %90 = vector.extract_strided_slice %10 {offsets = [13, 0], sizes = [1, 128], strides = [1, 1]} : vector<128x128xf32> to vector<1x128xf32>
    %91 = vector.extract_strided_slice %8 {offsets = [0, 13], sizes = [8, 1], strides = [1, 1]} : vector<8x128xf32> to vector<8x1xf32>
    %92 = vector.broadcast %90 : vector<1x128xf32> to vector<8x128xf32>
    %93 = vector.broadcast %91 : vector<8x1xf32> to vector<8x128xf32>
    %94 = arith.addf %92, %93 : vector<8x128xf32>
    %95 = arith.maximumf %89, %94 : vector<8x128xf32>
    %96 = vector.extract_strided_slice %10 {offsets = [14, 0], sizes = [1, 128], strides = [1, 1]} : vector<128x128xf32> to vector<1x128xf32>
    %97 = vector.extract_strided_slice %8 {offsets = [0, 14], sizes = [8, 1], strides = [1, 1]} : vector<8x128xf32> to vector<8x1xf32>
    %98 = vector.broadcast %96 : vector<1x128xf32> to vector<8x128xf32>
    %99 = vector.broadcast %97 : vector<8x1xf32> to vector<8x128xf32>
    %100 = arith.addf %98, %99 : vector<8x128xf32>
    %101 = arith.maximumf %95, %100 : vector<8x128xf32>
    %102 = vector.extract_strided_slice %10 {offsets = [15, 0], sizes = [1, 128], strides = [1, 1]} : vector<128x128xf32> to vector<1x128xf32>
    %103 = vector.extract_strided_slice %8 {offsets = [0, 15], sizes = [8, 1], strides = [1, 1]} : vector<8x128xf32> to vector<8x1xf32>
    %104 = vector.broadcast %102 : vector<1x128xf32> to vector<8x128xf32>
    %105 = vector.broadcast %103 : vector<8x1xf32> to vector<8x128xf32>
    %106 = arith.addf %104, %105 : vector<8x128xf32>
    %107 = arith.maximumf %101, %106 : vector<8x128xf32>
    %108 = vector.extract_strided_slice %10 {offsets = [16, 0], sizes = [1, 128], strides = [1, 1]} : vector<128x128xf32> to vector<1x128xf32>
    %109 = vector.extract_strided_slice %8 {offsets = [0, 16], sizes = [8, 1], strides = [1, 1]} : vector<8x128xf32> to vector<8x1xf32>
    %110 = vector.broadcast %108 : vector<1x128xf32> to vector<8x128xf32>
    %111 = vector.broadcast %109 : vector<8x1xf32> to vector<8x128xf32>
    %112 = arith.addf %110, %111 : vector<8x128xf32>
    %113 = arith.maximumf %107, %112 : vector<8x128xf32>
    %114 = vector.extract_strided_slice %10 {offsets = [17, 0], sizes = [1, 128], strides = [1, 1]} : vector<128x128xf32> to vector<1x128xf32>
    %115 = vector.extract_strided_slice %8 {offsets = [0, 17], sizes = [8, 1], strides = [1, 1]} : vector<8x128xf32> to vector<8x1xf32>
    %116 = vector.broadcast %114 : vector<1x128xf32> to vector<8x128xf32>
    %117 = vector.broadcast %115 : vector<8x1xf32> to vector<8x128xf32>
    %118 = arith.addf %116, %117 : vector<8x128xf32>
    %119 = arith.maximumf %113, %118 : vector<8x128xf32>
    %120 = vector.extract_strided_slice %10 {offsets = [18, 0], sizes = [1, 128], strides = [1, 1]} : vector<128x128xf32> to vector<1x128xf32>
    %121 = vector.extract_strided_slice %8 {offsets = [0, 18], sizes = [8, 1], strides = [1, 1]} : vector<8x128xf32> to vector<8x1xf32>
    %122 = vector.broadcast %120 : vector<1x128xf32> to vector<8x128xf32>
    %123 = vector.broadcast %121 : vector<8x1xf32> to vector<8x128xf32>
    %124 = arith.addf %122, %123 : vector<8x128xf32>
    %125 = arith.maximumf %119, %124 : vector<8x128xf32>
    %126 = vector.extract_strided_slice %10 {offsets = [19, 0], sizes = [1, 128], strides = [1, 1]} : vector<128x128xf32> to vector<1x128xf32>
    %127 = vector.extract_strided_slice %8 {offsets = [0, 19], sizes = [8, 1], strides = [1, 1]} : vector<8x128xf32> to vector<8x1xf32>
    %128 = vector.broadcast %126 : vector<1x128xf32> to vector<8x128xf32>
    %129 = vector.broadcast %127 : vector<8x1xf32> to vector<8x128xf32>
    %130 = arith.addf %128, %129 : vector<8x128xf32>
    %131 = arith.maximumf %125, %130 : vector<8x128xf32>
    %132 = vector.extract_strided_slice %10 {offsets = [20, 0], sizes = [1, 128], strides = [1, 1]} : vector<128x128xf32> to vector<1x128xf32>
    %133 = vector.extract_strided_slice %8 {offsets = [0, 20], sizes = [8, 1], strides = [1, 1]} : vector<8x128xf32> to vector<8x1xf32>
    %134 = vector.broadcast %132 : vector<1x128xf32> to vector<8x128xf32>
    %135 = vector.broadcast %133 : vector<8x1xf32> to vector<8x128xf32>
    %136 = arith.addf %134, %135 : vector<8x128xf32>
    %137 = arith.maximumf %131, %136 : vector<8x128xf32>
    %138 = vector.extract_strided_slice %10 {offsets = [21, 0], sizes = [1, 128], strides = [1, 1]} : vector<128x128xf32> to vector<1x128xf32>
    %139 = vector.extract_strided_slice %8 {offsets = [0, 21], sizes = [8, 1], strides = [1, 1]} : vector<8x128xf32> to vector<8x1xf32>
    %140 = vector.broadcast %138 : vector<1x128xf32> to vector<8x128xf32>
    %141 = vector.broadcast %139 : vector<8x1xf32> to vector<8x128xf32>
    %142 = arith.addf %140, %141 : vector<8x128xf32>
    %143 = arith.maximumf %137, %142 : vector<8x128xf32>
    %144 = vector.extract_strided_slice %10 {offsets = [22, 0], sizes = [1, 128], strides = [1, 1]} : vector<128x128xf32> to vector<1x128xf32>
    %145 = vector.extract_strided_slice %8 {offsets = [0, 22], sizes = [8, 1], strides = [1, 1]} : vector<8x128xf32> to vector<8x1xf32>
    %146 = vector.broadcast %144 : vector<1x128xf32> to vector<8x128xf32>
    %147 = vector.broadcast %145 : vector<8x1xf32> to vector<8x128xf32>
    %148 = arith.addf %146, %147 : vector<8x128xf32>
    %149 = arith.maximumf %143, %148 : vector<8x128xf32>
    %150 = vector.extract_strided_slice %10 {offsets = [23, 0], sizes = [1, 128], strides = [1, 1]} : vector<128x128xf32> to vector<1x128xf32>
    %151 = vector.extract_strided_slice %8 {offsets = [0, 23], sizes = [8, 1], strides = [1, 1]} : vector<8x128xf32> to vector<8x1xf32>
    %152 = vector.broadcast %150 : vector<1x128xf32> to vector<8x128xf32>
    %153 = vector.broadcast %151 : vector<8x1xf32> to vector<8x128xf32>
    %154 = arith.addf %152, %153 : vector<8x128xf32>
    %155 = arith.maximumf %149, %154 : vector<8x128xf32>
    %156 = vector.extract_strided_slice %10 {offsets = [24, 0], sizes = [1, 128], strides = [1, 1]} : vector<128x128xf32> to vector<1x128xf32>
    %157 = vector.extract_strided_slice %8 {offsets = [0, 24], sizes = [8, 1], strides = [1, 1]} : vector<8x128xf32> to vector<8x1xf32>
    %158 = vector.broadcast %156 : vector<1x128xf32> to vector<8x128xf32>
    %159 = vector.broadcast %157 : vector<8x1xf32> to vector<8x128xf32>
    %160 = arith.addf %158, %159 : vector<8x128xf32>
    %161 = arith.maximumf %155, %160 : vector<8x128xf32>
    %162 = vector.extract_strided_slice %10 {offsets = [25, 0], sizes = [1, 128], strides = [1, 1]} : vector<128x128xf32> to vector<1x128xf32>
    %163 = vector.extract_strided_slice %8 {offsets = [0, 25], sizes = [8, 1], strides = [1, 1]} : vector<8x128xf32> to vector<8x1xf32>
    %164 = vector.broadcast %162 : vector<1x128xf32> to vector<8x128xf32>
    %165 = vector.broadcast %163 : vector<8x1xf32> to vector<8x128xf32>
    %166 = arith.addf %164, %165 : vector<8x128xf32>
    %167 = arith.maximumf %161, %166 : vector<8x128xf32>
    %168 = vector.extract_strided_slice %10 {offsets = [26, 0], sizes = [1, 128], strides = [1, 1]} : vector<128x128xf32> to vector<1x128xf32>
    %169 = vector.extract_strided_slice %8 {offsets = [0, 26], sizes = [8, 1], strides = [1, 1]} : vector<8x128xf32> to vector<8x1xf32>
    %170 = vector.broadcast %168 : vector<1x128xf32> to vector<8x128xf32>
    %171 = vector.broadcast %169 : vector<8x1xf32> to vector<8x128xf32>
    %172 = arith.addf %170, %171 : vector<8x128xf32>
    %173 = arith.maximumf %167, %172 : vector<8x128xf32>
    %174 = vector.extract_strided_slice %10 {offsets = [27, 0], sizes = [1, 128], strides = [1, 1]} : vector<128x128xf32> to vector<1x128xf32>
    %175 = vector.extract_strided_slice %8 {offsets = [0, 27], sizes = [8, 1], strides = [1, 1]} : vector<8x128xf32> to vector<8x1xf32>
    %176 = vector.broadcast %174 : vector<1x128xf32> to vector<8x128xf32>
    %177 = vector.broadcast %175 : vector<8x1xf32> to vector<8x128xf32>
    %178 = arith.addf %176, %177 : vector<8x128xf32>
    %179 = arith.maximumf %173, %178 : vector<8x128xf32>
    %180 = vector.extract_strided_slice %10 {offsets = [28, 0], sizes = [1, 128], strides = [1, 1]} : vector<128x128xf32> to vector<1x128xf32>
    %181 = vector.extract_strided_slice %8 {offsets = [0, 28], sizes = [8, 1], strides = [1, 1]} : vector<8x128xf32> to vector<8x1xf32>
    %182 = vector.broadcast %180 : vector<1x128xf32> to vector<8x128xf32>
    %183 = vector.broadcast %181 : vector<8x1xf32> to vector<8x128xf32>
    %184 = arith.addf %182, %183 : vector<8x128xf32>
    %185 = arith.maximumf %179, %184 : vector<8x128xf32>
    %186 = vector.extract_strided_slice %10 {offsets = [29, 0], sizes = [1, 128], strides = [1, 1]} : vector<128x128xf32> to vector<1x128xf32>
    %187 = vector.extract_strided_slice %8 {offsets = [0, 29], sizes = [8, 1], strides = [1, 1]} : vector<8x128xf32> to vector<8x1xf32>
    %188 = vector.broadcast %186 : vector<1x128xf32> to vector<8x128xf32>
    %189 = vector.broadcast %187 : vector<8x1xf32> to vector<8x128xf32>
    %190 = arith.addf %188, %189 : vector<8x128xf32>
    %191 = arith.maximumf %185, %190 : vector<8x128xf32>
    %192 = vector.extract_strided_slice %10 {offsets = [30, 0], sizes = [1, 128], strides = [1, 1]} : vector<128x128xf32> to vector<1x128xf32>
    %193 = vector.extract_strided_slice %8 {offsets = [0, 30], sizes = [8, 1], strides = [1, 1]} : vector<8x128xf32> to vector<8x1xf32>
    %194 = vector.broadcast %192 : vector<1x128xf32> to vector<8x128xf32>
    %195 = vector.broadcast %193 : vector<8x1xf32> to vector<8x128xf32>
    %196 = arith.addf %194, %195 : vector<8x128xf32>
    %197 = arith.maximumf %191, %196 : vector<8x128xf32>
    %198 = vector.extract_strided_slice %10 {offsets = [31, 0], sizes = [1, 128], strides = [1, 1]} : vector<128x128xf32> to vector<1x128xf32>
    %199 = vector.extract_strided_slice %8 {offsets = [0, 31], sizes = [8, 1], strides = [1, 1]} : vector<8x128xf32> to vector<8x1xf32>
    %200 = vector.broadcast %198 : vector<1x128xf32> to vector<8x128xf32>
    %201 = vector.broadcast %199 : vector<8x1xf32> to vector<8x128xf32>
    %202 = arith.addf %200, %201 : vector<8x128xf32>
    %203 = arith.maximumf %197, %202 : vector<8x128xf32>
    %204 = vector.extract_strided_slice %10 {offsets = [32, 0], sizes = [1, 128], strides = [1, 1]} : vector<128x128xf32> to vector<1x128xf32>
    %205 = vector.extract_strided_slice %8 {offsets = [0, 32], sizes = [8, 1], strides = [1, 1]} : vector<8x128xf32> to vector<8x1xf32>
    %206 = vector.broadcast %204 : vector<1x128xf32> to vector<8x128xf32>
    %207 = vector.broadcast %205 : vector<8x1xf32> to vector<8x128xf32>
    %208 = arith.addf %206, %207 : vector<8x128xf32>
    %209 = arith.maximumf %203, %208 : vector<8x128xf32>
    %210 = vector.extract_strided_slice %10 {offsets = [33, 0], sizes = [1, 128], strides = [1, 1]} : vector<128x128xf32> to vector<1x128xf32>
    %211 = vector.extract_strided_slice %8 {offsets = [0, 33], sizes = [8, 1], strides = [1, 1]} : vector<8x128xf32> to vector<8x1xf32>
    %212 = vector.broadcast %210 : vector<1x128xf32> to vector<8x128xf32>
    %213 = vector.broadcast %211 : vector<8x1xf32> to vector<8x128xf32>
    %214 = arith.addf %212, %213 : vector<8x128xf32>
    %215 = arith.maximumf %209, %214 : vector<8x128xf32>
    %216 = vector.extract_strided_slice %10 {offsets = [34, 0], sizes = [1, 128], strides = [1, 1]} : vector<128x128xf32> to vector<1x128xf32>
    %217 = vector.extract_strided_slice %8 {offsets = [0, 34], sizes = [8, 1], strides = [1, 1]} : vector<8x128xf32> to vector<8x1xf32>
    %218 = vector.broadcast %216 : vector<1x128xf32> to vector<8x128xf32>
    %219 = vector.broadcast %217 : vector<8x1xf32> to vector<8x128xf32>
    %220 = arith.addf %218, %219 : vector<8x128xf32>
    %221 = arith.maximumf %215, %220 : vector<8x128xf32>
    %222 = vector.extract_strided_slice %10 {offsets = [35, 0], sizes = [1, 128], strides = [1, 1]} : vector<128x128xf32> to vector<1x128xf32>
    %223 = vector.extract_strided_slice %8 {offsets = [0, 35], sizes = [8, 1], strides = [1, 1]} : vector<8x128xf32> to vector<8x1xf32>
    %224 = vector.broadcast %222 : vector<1x128xf32> to vector<8x128xf32>
    %225 = vector.broadcast %223 : vector<8x1xf32> to vector<8x128xf32>
    %226 = arith.addf %224, %225 : vector<8x128xf32>
    %227 = arith.maximumf %221, %226 : vector<8x128xf32>
    %228 = vector.extract_strided_slice %10 {offsets = [36, 0], sizes = [1, 128], strides = [1, 1]} : vector<128x128xf32> to vector<1x128xf32>
    %229 = vector.extract_strided_slice %8 {offsets = [0, 36], sizes = [8, 1], strides = [1, 1]} : vector<8x128xf32> to vector<8x1xf32>
    %230 = vector.broadcast %228 : vector<1x128xf32> to vector<8x128xf32>
    %231 = vector.broadcast %229 : vector<8x1xf32> to vector<8x128xf32>
    %232 = arith.addf %230, %231 : vector<8x128xf32>
    %233 = arith.maximumf %227, %232 : vector<8x128xf32>
    %234 = vector.extract_strided_slice %10 {offsets = [37, 0], sizes = [1, 128], strides = [1, 1]} : vector<128x128xf32> to vector<1x128xf32>
    %235 = vector.extract_strided_slice %8 {offsets = [0, 37], sizes = [8, 1], strides = [1, 1]} : vector<8x128xf32> to vector<8x1xf32>
    %236 = vector.broadcast %234 : vector<1x128xf32> to vector<8x128xf32>
    %237 = vector.broadcast %235 : vector<8x1xf32> to vector<8x128xf32>
    %238 = arith.addf %236, %237 : vector<8x128xf32>
    %239 = arith.maximumf %233, %238 : vector<8x128xf32>
    %240 = vector.extract_strided_slice %10 {offsets = [38, 0], sizes = [1, 128], strides = [1, 1]} : vector<128x128xf32> to vector<1x128xf32>
    %241 = vector.extract_strided_slice %8 {offsets = [0, 38], sizes = [8, 1], strides = [1, 1]} : vector<8x128xf32> to vector<8x1xf32>
    %242 = vector.broadcast %240 : vector<1x128xf32> to vector<8x128xf32>
    %243 = vector.broadcast %241 : vector<8x1xf32> to vector<8x128xf32>
    %244 = arith.addf %242, %243 : vector<8x128xf32>
    %245 = arith.maximumf %239, %244 : vector<8x128xf32>
    %246 = vector.extract_strided_slice %10 {offsets = [39, 0], sizes = [1, 128], strides = [1, 1]} : vector<128x128xf32> to vector<1x128xf32>
    %247 = vector.extract_strided_slice %8 {offsets = [0, 39], sizes = [8, 1], strides = [1, 1]} : vector<8x128xf32> to vector<8x1xf32>
    %248 = vector.broadcast %246 : vector<1x128xf32> to vector<8x128xf32>
    %249 = vector.broadcast %247 : vector<8x1xf32> to vector<8x128xf32>
    %250 = arith.addf %248, %249 : vector<8x128xf32>
    %251 = arith.maximumf %245, %250 : vector<8x128xf32>
    %252 = vector.extract_strided_slice %10 {offsets = [40, 0], sizes = [1, 128], strides = [1, 1]} : vector<128x128xf32> to vector<1x128xf32>
    %253 = vector.extract_strided_slice %8 {offsets = [0, 40], sizes = [8, 1], strides = [1, 1]} : vector<8x128xf32> to vector<8x1xf32>
    %254 = vector.broadcast %252 : vector<1x128xf32> to vector<8x128xf32>
    %255 = vector.broadcast %253 : vector<8x1xf32> to vector<8x128xf32>
    %256 = arith.addf %254, %255 : vector<8x128xf32>
    %257 = arith.maximumf %251, %256 : vector<8x128xf32>
    %258 = vector.extract_strided_slice %10 {offsets = [41, 0], sizes = [1, 128], strides = [1, 1]} : vector<128x128xf32> to vector<1x128xf32>
    %259 = vector.extract_strided_slice %8 {offsets = [0, 41], sizes = [8, 1], strides = [1, 1]} : vector<8x128xf32> to vector<8x1xf32>
    %260 = vector.broadcast %258 : vector<1x128xf32> to vector<8x128xf32>
    %261 = vector.broadcast %259 : vector<8x1xf32> to vector<8x128xf32>
    %262 = arith.addf %260, %261 : vector<8x128xf32>
    %263 = arith.maximumf %257, %262 : vector<8x128xf32>
    %264 = vector.extract_strided_slice %10 {offsets = [42, 0], sizes = [1, 128], strides = [1, 1]} : vector<128x128xf32> to vector<1x128xf32>
    %265 = vector.extract_strided_slice %8 {offsets = [0, 42], sizes = [8, 1], strides = [1, 1]} : vector<8x128xf32> to vector<8x1xf32>
    %266 = vector.broadcast %264 : vector<1x128xf32> to vector<8x128xf32>
    %267 = vector.broadcast %265 : vector<8x1xf32> to vector<8x128xf32>
    %268 = arith.addf %266, %267 : vector<8x128xf32>
    %269 = arith.maximumf %263, %268 : vector<8x128xf32>
    %270 = vector.extract_strided_slice %10 {offsets = [43, 0], sizes = [1, 128], strides = [1, 1]} : vector<128x128xf32> to vector<1x128xf32>
    %271 = vector.extract_strided_slice %8 {offsets = [0, 43], sizes = [8, 1], strides = [1, 1]} : vector<8x128xf32> to vector<8x1xf32>
    %272 = vector.broadcast %270 : vector<1x128xf32> to vector<8x128xf32>
    %273 = vector.broadcast %271 : vector<8x1xf32> to vector<8x128xf32>
    %274 = arith.addf %272, %273 : vector<8x128xf32>
    %275 = arith.maximumf %269, %274 : vector<8x128xf32>
    %276 = vector.extract_strided_slice %10 {offsets = [44, 0], sizes = [1, 128], strides = [1, 1]} : vector<128x128xf32> to vector<1x128xf32>
    %277 = vector.extract_strided_slice %8 {offsets = [0, 44], sizes = [8, 1], strides = [1, 1]} : vector<8x128xf32> to vector<8x1xf32>
    %278 = vector.broadcast %276 : vector<1x128xf32> to vector<8x128xf32>
    %279 = vector.broadcast %277 : vector<8x1xf32> to vector<8x128xf32>
    %280 = arith.addf %278, %279 : vector<8x128xf32>
    %281 = arith.maximumf %275, %280 : vector<8x128xf32>
    %282 = vector.extract_strided_slice %10 {offsets = [45, 0], sizes = [1, 128], strides = [1, 1]} : vector<128x128xf32> to vector<1x128xf32>
    %283 = vector.extract_strided_slice %8 {offsets = [0, 45], sizes = [8, 1], strides = [1, 1]} : vector<8x128xf32> to vector<8x1xf32>
    %284 = vector.broadcast %282 : vector<1x128xf32> to vector<8x128xf32>
    %285 = vector.broadcast %283 : vector<8x1xf32> to vector<8x128xf32>
    %286 = arith.addf %284, %285 : vector<8x128xf32>
    %287 = arith.maximumf %281, %286 : vector<8x128xf32>
    %288 = vector.extract_strided_slice %10 {offsets = [46, 0], sizes = [1, 128], strides = [1, 1]} : vector<128x128xf32> to vector<1x128xf32>
    %289 = vector.extract_strided_slice %8 {offsets = [0, 46], sizes = [8, 1], strides = [1, 1]} : vector<8x128xf32> to vector<8x1xf32>
    %290 = vector.broadcast %288 : vector<1x128xf32> to vector<8x128xf32>
    %291 = vector.broadcast %289 : vector<8x1xf32> to vector<8x128xf32>
    %292 = arith.addf %290, %291 : vector<8x128xf32>
    %293 = arith.maximumf %287, %292 : vector<8x128xf32>
    %294 = vector.extract_strided_slice %10 {offsets = [47, 0], sizes = [1, 128], strides = [1, 1]} : vector<128x128xf32> to vector<1x128xf32>
    %295 = vector.extract_strided_slice %8 {offsets = [0, 47], sizes = [8, 1], strides = [1, 1]} : vector<8x128xf32> to vector<8x1xf32>
    %296 = vector.broadcast %294 : vector<1x128xf32> to vector<8x128xf32>
    %297 = vector.broadcast %295 : vector<8x1xf32> to vector<8x128xf32>
    %298 = arith.addf %296, %297 : vector<8x128xf32>
    %299 = arith.maximumf %293, %298 : vector<8x128xf32>
    %300 = vector.extract_strided_slice %10 {offsets = [48, 0], sizes = [1, 128], strides = [1, 1]} : vector<128x128xf32> to vector<1x128xf32>
    %301 = vector.extract_strided_slice %8 {offsets = [0, 48], sizes = [8, 1], strides = [1, 1]} : vector<8x128xf32> to vector<8x1xf32>
    %302 = vector.broadcast %300 : vector<1x128xf32> to vector<8x128xf32>
    %303 = vector.broadcast %301 : vector<8x1xf32> to vector<8x128xf32>
    %304 = arith.addf %302, %303 : vector<8x128xf32>
    %305 = arith.maximumf %299, %304 : vector<8x128xf32>
    %306 = vector.extract_strided_slice %10 {offsets = [49, 0], sizes = [1, 128], strides = [1, 1]} : vector<128x128xf32> to vector<1x128xf32>
    %307 = vector.extract_strided_slice %8 {offsets = [0, 49], sizes = [8, 1], strides = [1, 1]} : vector<8x128xf32> to vector<8x1xf32>
    %308 = vector.broadcast %306 : vector<1x128xf32> to vector<8x128xf32>
    %309 = vector.broadcast %307 : vector<8x1xf32> to vector<8x128xf32>
    %310 = arith.addf %308, %309 : vector<8x128xf32>
    %311 = arith.maximumf %305, %310 : vector<8x128xf32>
    %312 = vector.extract_strided_slice %10 {offsets = [50, 0], sizes = [1, 128], strides = [1, 1]} : vector<128x128xf32> to vector<1x128xf32>
    %313 = vector.extract_strided_slice %8 {offsets = [0, 50], sizes = [8, 1], strides = [1, 1]} : vector<8x128xf32> to vector<8x1xf32>
    %314 = vector.broadcast %312 : vector<1x128xf32> to vector<8x128xf32>
    %315 = vector.broadcast %313 : vector<8x1xf32> to vector<8x128xf32>
    %316 = arith.addf %314, %315 : vector<8x128xf32>
    %317 = arith.maximumf %311, %316 : vector<8x128xf32>
    %318 = vector.extract_strided_slice %10 {offsets = [51, 0], sizes = [1, 128], strides = [1, 1]} : vector<128x128xf32> to vector<1x128xf32>
    %319 = vector.extract_strided_slice %8 {offsets = [0, 51], sizes = [8, 1], strides = [1, 1]} : vector<8x128xf32> to vector<8x1xf32>
    %320 = vector.broadcast %318 : vector<1x128xf32> to vector<8x128xf32>
    %321 = vector.broadcast %319 : vector<8x1xf32> to vector<8x128xf32>
    %322 = arith.addf %320, %321 : vector<8x128xf32>
    %323 = arith.maximumf %317, %322 : vector<8x128xf32>
    %324 = vector.extract_strided_slice %10 {offsets = [52, 0], sizes = [1, 128], strides = [1, 1]} : vector<128x128xf32> to vector<1x128xf32>
    %325 = vector.extract_strided_slice %8 {offsets = [0, 52], sizes = [8, 1], strides = [1, 1]} : vector<8x128xf32> to vector<8x1xf32>
    %326 = vector.broadcast %324 : vector<1x128xf32> to vector<8x128xf32>
    %327 = vector.broadcast %325 : vector<8x1xf32> to vector<8x128xf32>
    %328 = arith.addf %326, %327 : vector<8x128xf32>
    %329 = arith.maximumf %323, %328 : vector<8x128xf32>
    %330 = vector.extract_strided_slice %10 {offsets = [53, 0], sizes = [1, 128], strides = [1, 1]} : vector<128x128xf32> to vector<1x128xf32>
    %331 = vector.extract_strided_slice %8 {offsets = [0, 53], sizes = [8, 1], strides = [1, 1]} : vector<8x128xf32> to vector<8x1xf32>
    %332 = vector.broadcast %330 : vector<1x128xf32> to vector<8x128xf32>
    %333 = vector.broadcast %331 : vector<8x1xf32> to vector<8x128xf32>
    %334 = arith.addf %332, %333 : vector<8x128xf32>
    %335 = arith.maximumf %329, %334 : vector<8x128xf32>
    %336 = vector.extract_strided_slice %10 {offsets = [54, 0], sizes = [1, 128], strides = [1, 1]} : vector<128x128xf32> to vector<1x128xf32>
    %337 = vector.extract_strided_slice %8 {offsets = [0, 54], sizes = [8, 1], strides = [1, 1]} : vector<8x128xf32> to vector<8x1xf32>
    %338 = vector.broadcast %336 : vector<1x128xf32> to vector<8x128xf32>
    %339 = vector.broadcast %337 : vector<8x1xf32> to vector<8x128xf32>
    %340 = arith.addf %338, %339 : vector<8x128xf32>
    %341 = arith.maximumf %335, %340 : vector<8x128xf32>
    %342 = vector.extract_strided_slice %10 {offsets = [55, 0], sizes = [1, 128], strides = [1, 1]} : vector<128x128xf32> to vector<1x128xf32>
    %343 = vector.extract_strided_slice %8 {offsets = [0, 55], sizes = [8, 1], strides = [1, 1]} : vector<8x128xf32> to vector<8x1xf32>
    %344 = vector.broadcast %342 : vector<1x128xf32> to vector<8x128xf32>
    %345 = vector.broadcast %343 : vector<8x1xf32> to vector<8x128xf32>
    %346 = arith.addf %344, %345 : vector<8x128xf32>
    %347 = arith.maximumf %341, %346 : vector<8x128xf32>
    %348 = vector.extract_strided_slice %10 {offsets = [56, 0], sizes = [1, 128], strides = [1, 1]} : vector<128x128xf32> to vector<1x128xf32>
    %349 = vector.extract_strided_slice %8 {offsets = [0, 56], sizes = [8, 1], strides = [1, 1]} : vector<8x128xf32> to vector<8x1xf32>
    %350 = vector.broadcast %348 : vector<1x128xf32> to vector<8x128xf32>
    %351 = vector.broadcast %349 : vector<8x1xf32> to vector<8x128xf32>
    %352 = arith.addf %350, %351 : vector<8x128xf32>
    %353 = arith.maximumf %347, %352 : vector<8x128xf32>
    %354 = vector.extract_strided_slice %10 {offsets = [57, 0], sizes = [1, 128], strides = [1, 1]} : vector<128x128xf32> to vector<1x128xf32>
    %355 = vector.extract_strided_slice %8 {offsets = [0, 57], sizes = [8, 1], strides = [1, 1]} : vector<8x128xf32> to vector<8x1xf32>
    %356 = vector.broadcast %354 : vector<1x128xf32> to vector<8x128xf32>
    %357 = vector.broadcast %355 : vector<8x1xf32> to vector<8x128xf32>
    %358 = arith.addf %356, %357 : vector<8x128xf32>
    %359 = arith.maximumf %353, %358 : vector<8x128xf32>
    %360 = vector.extract_strided_slice %10 {offsets = [58, 0], sizes = [1, 128], strides = [1, 1]} : vector<128x128xf32> to vector<1x128xf32>
    %361 = vector.extract_strided_slice %8 {offsets = [0, 58], sizes = [8, 1], strides = [1, 1]} : vector<8x128xf32> to vector<8x1xf32>
    %362 = vector.broadcast %360 : vector<1x128xf32> to vector<8x128xf32>
    %363 = vector.broadcast %361 : vector<8x1xf32> to vector<8x128xf32>
    %364 = arith.addf %362, %363 : vector<8x128xf32>
    %365 = arith.maximumf %359, %364 : vector<8x128xf32>
    %366 = vector.extract_strided_slice %10 {offsets = [59, 0], sizes = [1, 128], strides = [1, 1]} : vector<128x128xf32> to vector<1x128xf32>
    %367 = vector.extract_strided_slice %8 {offsets = [0, 59], sizes = [8, 1], strides = [1, 1]} : vector<8x128xf32> to vector<8x1xf32>
    %368 = vector.broadcast %366 : vector<1x128xf32> to vector<8x128xf32>
    %369 = vector.broadcast %367 : vector<8x1xf32> to vector<8x128xf32>
    %370 = arith.addf %368, %369 : vector<8x128xf32>
    %371 = arith.maximumf %365, %370 : vector<8x128xf32>
    %372 = vector.extract_strided_slice %10 {offsets = [60, 0], sizes = [1, 128], strides = [1, 1]} : vector<128x128xf32> to vector<1x128xf32>
    %373 = vector.extract_strided_slice %8 {offsets = [0, 60], sizes = [8, 1], strides = [1, 1]} : vector<8x128xf32> to vector<8x1xf32>
    %374 = vector.broadcast %372 : vector<1x128xf32> to vector<8x128xf32>
    %375 = vector.broadcast %373 : vector<8x1xf32> to vector<8x128xf32>
    %376 = arith.addf %374, %375 : vector<8x128xf32>
    %377 = arith.maximumf %371, %376 : vector<8x128xf32>
    %378 = vector.extract_strided_slice %10 {offsets = [61, 0], sizes = [1, 128], strides = [1, 1]} : vector<128x128xf32> to vector<1x128xf32>
    %379 = vector.extract_strided_slice %8 {offsets = [0, 61], sizes = [8, 1], strides = [1, 1]} : vector<8x128xf32> to vector<8x1xf32>
    %380 = vector.broadcast %378 : vector<1x128xf32> to vector<8x128xf32>
    %381 = vector.broadcast %379 : vector<8x1xf32> to vector<8x128xf32>
    %382 = arith.addf %380, %381 : vector<8x128xf32>
    %383 = arith.maximumf %377, %382 : vector<8x128xf32>
    %384 = vector.extract_strided_slice %10 {offsets = [62, 0], sizes = [1, 128], strides = [1, 1]} : vector<128x128xf32> to vector<1x128xf32>
    %385 = vector.extract_strided_slice %8 {offsets = [0, 62], sizes = [8, 1], strides = [1, 1]} : vector<8x128xf32> to vector<8x1xf32>
    %386 = vector.broadcast %384 : vector<1x128xf32> to vector<8x128xf32>
    %387 = vector.broadcast %385 : vector<8x1xf32> to vector<8x128xf32>
    %388 = arith.addf %386, %387 : vector<8x128xf32>
    %389 = arith.maximumf %383, %388 : vector<8x128xf32>
    %390 = vector.extract_strided_slice %10 {offsets = [63, 0], sizes = [1, 128], strides = [1, 1]} : vector<128x128xf32> to vector<1x128xf32>
    %391 = vector.extract_strided_slice %8 {offsets = [0, 63], sizes = [8, 1], strides = [1, 1]} : vector<8x128xf32> to vector<8x1xf32>
    %392 = vector.broadcast %390 : vector<1x128xf32> to vector<8x128xf32>
    %393 = vector.broadcast %391 : vector<8x1xf32> to vector<8x128xf32>
    %394 = arith.addf %392, %393 : vector<8x128xf32>
    %395 = arith.maximumf %389, %394 : vector<8x128xf32>
    %396 = vector.extract_strided_slice %10 {offsets = [64, 0], sizes = [1, 128], strides = [1, 1]} : vector<128x128xf32> to vector<1x128xf32>
    %397 = vector.extract_strided_slice %8 {offsets = [0, 64], sizes = [8, 1], strides = [1, 1]} : vector<8x128xf32> to vector<8x1xf32>
    %398 = vector.broadcast %396 : vector<1x128xf32> to vector<8x128xf32>
    %399 = vector.broadcast %397 : vector<8x1xf32> to vector<8x128xf32>
    %400 = arith.addf %398, %399 : vector<8x128xf32>
    %401 = arith.maximumf %395, %400 : vector<8x128xf32>
    %402 = vector.extract_strided_slice %10 {offsets = [65, 0], sizes = [1, 128], strides = [1, 1]} : vector<128x128xf32> to vector<1x128xf32>
    %403 = vector.extract_strided_slice %8 {offsets = [0, 65], sizes = [8, 1], strides = [1, 1]} : vector<8x128xf32> to vector<8x1xf32>
    %404 = vector.broadcast %402 : vector<1x128xf32> to vector<8x128xf32>
    %405 = vector.broadcast %403 : vector<8x1xf32> to vector<8x128xf32>
    %406 = arith.addf %404, %405 : vector<8x128xf32>
    %407 = arith.maximumf %401, %406 : vector<8x128xf32>
    %408 = vector.extract_strided_slice %10 {offsets = [66, 0], sizes = [1, 128], strides = [1, 1]} : vector<128x128xf32> to vector<1x128xf32>
    %409 = vector.extract_strided_slice %8 {offsets = [0, 66], sizes = [8, 1], strides = [1, 1]} : vector<8x128xf32> to vector<8x1xf32>
    %410 = vector.broadcast %408 : vector<1x128xf32> to vector<8x128xf32>
    %411 = vector.broadcast %409 : vector<8x1xf32> to vector<8x128xf32>
    %412 = arith.addf %410, %411 : vector<8x128xf32>
    %413 = arith.maximumf %407, %412 : vector<8x128xf32>
    %414 = vector.extract_strided_slice %10 {offsets = [67, 0], sizes = [1, 128], strides = [1, 1]} : vector<128x128xf32> to vector<1x128xf32>
    %415 = vector.extract_strided_slice %8 {offsets = [0, 67], sizes = [8, 1], strides = [1, 1]} : vector<8x128xf32> to vector<8x1xf32>
    %416 = vector.broadcast %414 : vector<1x128xf32> to vector<8x128xf32>
    %417 = vector.broadcast %415 : vector<8x1xf32> to vector<8x128xf32>
    %418 = arith.addf %416, %417 : vector<8x128xf32>
    %419 = arith.maximumf %413, %418 : vector<8x128xf32>
    %420 = vector.extract_strided_slice %10 {offsets = [68, 0], sizes = [1, 128], strides = [1, 1]} : vector<128x128xf32> to vector<1x128xf32>
    %421 = vector.extract_strided_slice %8 {offsets = [0, 68], sizes = [8, 1], strides = [1, 1]} : vector<8x128xf32> to vector<8x1xf32>
    %422 = vector.broadcast %420 : vector<1x128xf32> to vector<8x128xf32>
    %423 = vector.broadcast %421 : vector<8x1xf32> to vector<8x128xf32>
    %424 = arith.addf %422, %423 : vector<8x128xf32>
    %425 = arith.maximumf %419, %424 : vector<8x128xf32>
    %426 = vector.extract_strided_slice %10 {offsets = [69, 0], sizes = [1, 128], strides = [1, 1]} : vector<128x128xf32> to vector<1x128xf32>
    %427 = vector.extract_strided_slice %8 {offsets = [0, 69], sizes = [8, 1], strides = [1, 1]} : vector<8x128xf32> to vector<8x1xf32>
    %428 = vector.broadcast %426 : vector<1x128xf32> to vector<8x128xf32>
    %429 = vector.broadcast %427 : vector<8x1xf32> to vector<8x128xf32>
    %430 = arith.addf %428, %429 : vector<8x128xf32>
    %431 = arith.maximumf %425, %430 : vector<8x128xf32>
    %432 = vector.extract_strided_slice %10 {offsets = [70, 0], sizes = [1, 128], strides = [1, 1]} : vector<128x128xf32> to vector<1x128xf32>
    %433 = vector.extract_strided_slice %8 {offsets = [0, 70], sizes = [8, 1], strides = [1, 1]} : vector<8x128xf32> to vector<8x1xf32>
    %434 = vector.broadcast %432 : vector<1x128xf32> to vector<8x128xf32>
    %435 = vector.broadcast %433 : vector<8x1xf32> to vector<8x128xf32>
    %436 = arith.addf %434, %435 : vector<8x128xf32>
    %437 = arith.maximumf %431, %436 : vector<8x128xf32>
    %438 = vector.extract_strided_slice %10 {offsets = [71, 0], sizes = [1, 128], strides = [1, 1]} : vector<128x128xf32> to vector<1x128xf32>
    %439 = vector.extract_strided_slice %8 {offsets = [0, 71], sizes = [8, 1], strides = [1, 1]} : vector<8x128xf32> to vector<8x1xf32>
    %440 = vector.broadcast %438 : vector<1x128xf32> to vector<8x128xf32>
    %441 = vector.broadcast %439 : vector<8x1xf32> to vector<8x128xf32>
    %442 = arith.addf %440, %441 : vector<8x128xf32>
    %443 = arith.maximumf %437, %442 : vector<8x128xf32>
    %444 = vector.extract_strided_slice %10 {offsets = [72, 0], sizes = [1, 128], strides = [1, 1]} : vector<128x128xf32> to vector<1x128xf32>
    %445 = vector.extract_strided_slice %8 {offsets = [0, 72], sizes = [8, 1], strides = [1, 1]} : vector<8x128xf32> to vector<8x1xf32>
    %446 = vector.broadcast %444 : vector<1x128xf32> to vector<8x128xf32>
    %447 = vector.broadcast %445 : vector<8x1xf32> to vector<8x128xf32>
    %448 = arith.addf %446, %447 : vector<8x128xf32>
    %449 = arith.maximumf %443, %448 : vector<8x128xf32>
    %450 = vector.extract_strided_slice %10 {offsets = [73, 0], sizes = [1, 128], strides = [1, 1]} : vector<128x128xf32> to vector<1x128xf32>
    %451 = vector.extract_strided_slice %8 {offsets = [0, 73], sizes = [8, 1], strides = [1, 1]} : vector<8x128xf32> to vector<8x1xf32>
    %452 = vector.broadcast %450 : vector<1x128xf32> to vector<8x128xf32>
    %453 = vector.broadcast %451 : vector<8x1xf32> to vector<8x128xf32>
    %454 = arith.addf %452, %453 : vector<8x128xf32>
    %455 = arith.maximumf %449, %454 : vector<8x128xf32>
    %456 = vector.extract_strided_slice %10 {offsets = [74, 0], sizes = [1, 128], strides = [1, 1]} : vector<128x128xf32> to vector<1x128xf32>
    %457 = vector.extract_strided_slice %8 {offsets = [0, 74], sizes = [8, 1], strides = [1, 1]} : vector<8x128xf32> to vector<8x1xf32>
    %458 = vector.broadcast %456 : vector<1x128xf32> to vector<8x128xf32>
    %459 = vector.broadcast %457 : vector<8x1xf32> to vector<8x128xf32>
    %460 = arith.addf %458, %459 : vector<8x128xf32>
    %461 = arith.maximumf %455, %460 : vector<8x128xf32>
    %462 = vector.extract_strided_slice %10 {offsets = [75, 0], sizes = [1, 128], strides = [1, 1]} : vector<128x128xf32> to vector<1x128xf32>
    %463 = vector.extract_strided_slice %8 {offsets = [0, 75], sizes = [8, 1], strides = [1, 1]} : vector<8x128xf32> to vector<8x1xf32>
    %464 = vector.broadcast %462 : vector<1x128xf32> to vector<8x128xf32>
    %465 = vector.broadcast %463 : vector<8x1xf32> to vector<8x128xf32>
    %466 = arith.addf %464, %465 : vector<8x128xf32>
    %467 = arith.maximumf %461, %466 : vector<8x128xf32>
    %468 = vector.extract_strided_slice %10 {offsets = [76, 0], sizes = [1, 128], strides = [1, 1]} : vector<128x128xf32> to vector<1x128xf32>
    %469 = vector.extract_strided_slice %8 {offsets = [0, 76], sizes = [8, 1], strides = [1, 1]} : vector<8x128xf32> to vector<8x1xf32>
    %470 = vector.broadcast %468 : vector<1x128xf32> to vector<8x128xf32>
    %471 = vector.broadcast %469 : vector<8x1xf32> to vector<8x128xf32>
    %472 = arith.addf %470, %471 : vector<8x128xf32>
    %473 = arith.maximumf %467, %472 : vector<8x128xf32>
    %474 = vector.extract_strided_slice %10 {offsets = [77, 0], sizes = [1, 128], strides = [1, 1]} : vector<128x128xf32> to vector<1x128xf32>
    %475 = vector.extract_strided_slice %8 {offsets = [0, 77], sizes = [8, 1], strides = [1, 1]} : vector<8x128xf32> to vector<8x1xf32>
    %476 = vector.broadcast %474 : vector<1x128xf32> to vector<8x128xf32>
    %477 = vector.broadcast %475 : vector<8x1xf32> to vector<8x128xf32>
    %478 = arith.addf %476, %477 : vector<8x128xf32>
    %479 = arith.maximumf %473, %478 : vector<8x128xf32>
    %480 = vector.extract_strided_slice %10 {offsets = [78, 0], sizes = [1, 128], strides = [1, 1]} : vector<128x128xf32> to vector<1x128xf32>
    %481 = vector.extract_strided_slice %8 {offsets = [0, 78], sizes = [8, 1], strides = [1, 1]} : vector<8x128xf32> to vector<8x1xf32>
    %482 = vector.broadcast %480 : vector<1x128xf32> to vector<8x128xf32>
    %483 = vector.broadcast %481 : vector<8x1xf32> to vector<8x128xf32>
    %484 = arith.addf %482, %483 : vector<8x128xf32>
    %485 = arith.maximumf %479, %484 : vector<8x128xf32>
    %486 = vector.extract_strided_slice %10 {offsets = [79, 0], sizes = [1, 128], strides = [1, 1]} : vector<128x128xf32> to vector<1x128xf32>
    %487 = vector.extract_strided_slice %8 {offsets = [0, 79], sizes = [8, 1], strides = [1, 1]} : vector<8x128xf32> to vector<8x1xf32>
    %488 = vector.broadcast %486 : vector<1x128xf32> to vector<8x128xf32>
    %489 = vector.broadcast %487 : vector<8x1xf32> to vector<8x128xf32>
    %490 = arith.addf %488, %489 : vector<8x128xf32>
    %491 = arith.maximumf %485, %490 : vector<8x128xf32>
    %492 = vector.extract_strided_slice %10 {offsets = [80, 0], sizes = [1, 128], strides = [1, 1]} : vector<128x128xf32> to vector<1x128xf32>
    %493 = vector.extract_strided_slice %8 {offsets = [0, 80], sizes = [8, 1], strides = [1, 1]} : vector<8x128xf32> to vector<8x1xf32>
    %494 = vector.broadcast %492 : vector<1x128xf32> to vector<8x128xf32>
    %495 = vector.broadcast %493 : vector<8x1xf32> to vector<8x128xf32>
    %496 = arith.addf %494, %495 : vector<8x128xf32>
    %497 = arith.maximumf %491, %496 : vector<8x128xf32>
    %498 = vector.extract_strided_slice %10 {offsets = [81, 0], sizes = [1, 128], strides = [1, 1]} : vector<128x128xf32> to vector<1x128xf32>
    %499 = vector.extract_strided_slice %8 {offsets = [0, 81], sizes = [8, 1], strides = [1, 1]} : vector<8x128xf32> to vector<8x1xf32>
    %500 = vector.broadcast %498 : vector<1x128xf32> to vector<8x128xf32>
    %501 = vector.broadcast %499 : vector<8x1xf32> to vector<8x128xf32>
    %502 = arith.addf %500, %501 : vector<8x128xf32>
    %503 = arith.maximumf %497, %502 : vector<8x128xf32>
    %504 = vector.extract_strided_slice %10 {offsets = [82, 0], sizes = [1, 128], strides = [1, 1]} : vector<128x128xf32> to vector<1x128xf32>
    %505 = vector.extract_strided_slice %8 {offsets = [0, 82], sizes = [8, 1], strides = [1, 1]} : vector<8x128xf32> to vector<8x1xf32>
    %506 = vector.broadcast %504 : vector<1x128xf32> to vector<8x128xf32>
    %507 = vector.broadcast %505 : vector<8x1xf32> to vector<8x128xf32>
    %508 = arith.addf %506, %507 : vector<8x128xf32>
    %509 = arith.maximumf %503, %508 : vector<8x128xf32>
    %510 = vector.extract_strided_slice %10 {offsets = [83, 0], sizes = [1, 128], strides = [1, 1]} : vector<128x128xf32> to vector<1x128xf32>
    %511 = vector.extract_strided_slice %8 {offsets = [0, 83], sizes = [8, 1], strides = [1, 1]} : vector<8x128xf32> to vector<8x1xf32>
    %512 = vector.broadcast %510 : vector<1x128xf32> to vector<8x128xf32>
    %513 = vector.broadcast %511 : vector<8x1xf32> to vector<8x128xf32>
    %514 = arith.addf %512, %513 : vector<8x128xf32>
    %515 = arith.maximumf %509, %514 : vector<8x128xf32>
    %516 = vector.extract_strided_slice %10 {offsets = [84, 0], sizes = [1, 128], strides = [1, 1]} : vector<128x128xf32> to vector<1x128xf32>
    %517 = vector.extract_strided_slice %8 {offsets = [0, 84], sizes = [8, 1], strides = [1, 1]} : vector<8x128xf32> to vector<8x1xf32>
    %518 = vector.broadcast %516 : vector<1x128xf32> to vector<8x128xf32>
    %519 = vector.broadcast %517 : vector<8x1xf32> to vector<8x128xf32>
    %520 = arith.addf %518, %519 : vector<8x128xf32>
    %521 = arith.maximumf %515, %520 : vector<8x128xf32>
    %522 = vector.extract_strided_slice %10 {offsets = [85, 0], sizes = [1, 128], strides = [1, 1]} : vector<128x128xf32> to vector<1x128xf32>
    %523 = vector.extract_strided_slice %8 {offsets = [0, 85], sizes = [8, 1], strides = [1, 1]} : vector<8x128xf32> to vector<8x1xf32>
    %524 = vector.broadcast %522 : vector<1x128xf32> to vector<8x128xf32>
    %525 = vector.broadcast %523 : vector<8x1xf32> to vector<8x128xf32>
    %526 = arith.addf %524, %525 : vector<8x128xf32>
    %527 = arith.maximumf %521, %526 : vector<8x128xf32>
    %528 = vector.extract_strided_slice %10 {offsets = [86, 0], sizes = [1, 128], strides = [1, 1]} : vector<128x128xf32> to vector<1x128xf32>
    %529 = vector.extract_strided_slice %8 {offsets = [0, 86], sizes = [8, 1], strides = [1, 1]} : vector<8x128xf32> to vector<8x1xf32>
    %530 = vector.broadcast %528 : vector<1x128xf32> to vector<8x128xf32>
    %531 = vector.broadcast %529 : vector<8x1xf32> to vector<8x128xf32>
    %532 = arith.addf %530, %531 : vector<8x128xf32>
    %533 = arith.maximumf %527, %532 : vector<8x128xf32>
    %534 = vector.extract_strided_slice %10 {offsets = [87, 0], sizes = [1, 128], strides = [1, 1]} : vector<128x128xf32> to vector<1x128xf32>
    %535 = vector.extract_strided_slice %8 {offsets = [0, 87], sizes = [8, 1], strides = [1, 1]} : vector<8x128xf32> to vector<8x1xf32>
    %536 = vector.broadcast %534 : vector<1x128xf32> to vector<8x128xf32>
    %537 = vector.broadcast %535 : vector<8x1xf32> to vector<8x128xf32>
    %538 = arith.addf %536, %537 : vector<8x128xf32>
    %539 = arith.maximumf %533, %538 : vector<8x128xf32>
    %540 = vector.extract_strided_slice %10 {offsets = [88, 0], sizes = [1, 128], strides = [1, 1]} : vector<128x128xf32> to vector<1x128xf32>
    %541 = vector.extract_strided_slice %8 {offsets = [0, 88], sizes = [8, 1], strides = [1, 1]} : vector<8x128xf32> to vector<8x1xf32>
    %542 = vector.broadcast %540 : vector<1x128xf32> to vector<8x128xf32>
    %543 = vector.broadcast %541 : vector<8x1xf32> to vector<8x128xf32>
    %544 = arith.addf %542, %543 : vector<8x128xf32>
    %545 = arith.maximumf %539, %544 : vector<8x128xf32>
    %546 = vector.extract_strided_slice %10 {offsets = [89, 0], sizes = [1, 128], strides = [1, 1]} : vector<128x128xf32> to vector<1x128xf32>
    %547 = vector.extract_strided_slice %8 {offsets = [0, 89], sizes = [8, 1], strides = [1, 1]} : vector<8x128xf32> to vector<8x1xf32>
    %548 = vector.broadcast %546 : vector<1x128xf32> to vector<8x128xf32>
    %549 = vector.broadcast %547 : vector<8x1xf32> to vector<8x128xf32>
    %550 = arith.addf %548, %549 : vector<8x128xf32>
    %551 = arith.maximumf %545, %550 : vector<8x128xf32>
    %552 = vector.extract_strided_slice %10 {offsets = [90, 0], sizes = [1, 128], strides = [1, 1]} : vector<128x128xf32> to vector<1x128xf32>
    %553 = vector.extract_strided_slice %8 {offsets = [0, 90], sizes = [8, 1], strides = [1, 1]} : vector<8x128xf32> to vector<8x1xf32>
    %554 = vector.broadcast %552 : vector<1x128xf32> to vector<8x128xf32>
    %555 = vector.broadcast %553 : vector<8x1xf32> to vector<8x128xf32>
    %556 = arith.addf %554, %555 : vector<8x128xf32>
    %557 = arith.maximumf %551, %556 : vector<8x128xf32>
    %558 = vector.extract_strided_slice %10 {offsets = [91, 0], sizes = [1, 128], strides = [1, 1]} : vector<128x128xf32> to vector<1x128xf32>
    %559 = vector.extract_strided_slice %8 {offsets = [0, 91], sizes = [8, 1], strides = [1, 1]} : vector<8x128xf32> to vector<8x1xf32>
    %560 = vector.broadcast %558 : vector<1x128xf32> to vector<8x128xf32>
    %561 = vector.broadcast %559 : vector<8x1xf32> to vector<8x128xf32>
    %562 = arith.addf %560, %561 : vector<8x128xf32>
    %563 = arith.maximumf %557, %562 : vector<8x128xf32>
    %564 = vector.extract_strided_slice %10 {offsets = [92, 0], sizes = [1, 128], strides = [1, 1]} : vector<128x128xf32> to vector<1x128xf32>
    %565 = vector.extract_strided_slice %8 {offsets = [0, 92], sizes = [8, 1], strides = [1, 1]} : vector<8x128xf32> to vector<8x1xf32>
    %566 = vector.broadcast %564 : vector<1x128xf32> to vector<8x128xf32>
    %567 = vector.broadcast %565 : vector<8x1xf32> to vector<8x128xf32>
    %568 = arith.addf %566, %567 : vector<8x128xf32>
    %569 = arith.maximumf %563, %568 : vector<8x128xf32>
    %570 = vector.extract_strided_slice %10 {offsets = [93, 0], sizes = [1, 128], strides = [1, 1]} : vector<128x128xf32> to vector<1x128xf32>
    %571 = vector.extract_strided_slice %8 {offsets = [0, 93], sizes = [8, 1], strides = [1, 1]} : vector<8x128xf32> to vector<8x1xf32>
    %572 = vector.broadcast %570 : vector<1x128xf32> to vector<8x128xf32>
    %573 = vector.broadcast %571 : vector<8x1xf32> to vector<8x128xf32>
    %574 = arith.addf %572, %573 : vector<8x128xf32>
    %575 = arith.maximumf %569, %574 : vector<8x128xf32>
    %576 = vector.extract_strided_slice %10 {offsets = [94, 0], sizes = [1, 128], strides = [1, 1]} : vector<128x128xf32> to vector<1x128xf32>
    %577 = vector.extract_strided_slice %8 {offsets = [0, 94], sizes = [8, 1], strides = [1, 1]} : vector<8x128xf32> to vector<8x1xf32>
    %578 = vector.broadcast %576 : vector<1x128xf32> to vector<8x128xf32>
    %579 = vector.broadcast %577 : vector<8x1xf32> to vector<8x128xf32>
    %580 = arith.addf %578, %579 : vector<8x128xf32>
    %581 = arith.maximumf %575, %580 : vector<8x128xf32>
    %582 = vector.extract_strided_slice %10 {offsets = [95, 0], sizes = [1, 128], strides = [1, 1]} : vector<128x128xf32> to vector<1x128xf32>
    %583 = vector.extract_strided_slice %8 {offsets = [0, 95], sizes = [8, 1], strides = [1, 1]} : vector<8x128xf32> to vector<8x1xf32>
    %584 = vector.broadcast %582 : vector<1x128xf32> to vector<8x128xf32>
    %585 = vector.broadcast %583 : vector<8x1xf32> to vector<8x128xf32>
    %586 = arith.addf %584, %585 : vector<8x128xf32>
    %587 = arith.maximumf %581, %586 : vector<8x128xf32>
    %588 = vector.extract_strided_slice %10 {offsets = [96, 0], sizes = [1, 128], strides = [1, 1]} : vector<128x128xf32> to vector<1x128xf32>
    %589 = vector.extract_strided_slice %8 {offsets = [0, 96], sizes = [8, 1], strides = [1, 1]} : vector<8x128xf32> to vector<8x1xf32>
    %590 = vector.broadcast %588 : vector<1x128xf32> to vector<8x128xf32>
    %591 = vector.broadcast %589 : vector<8x1xf32> to vector<8x128xf32>
    %592 = arith.addf %590, %591 : vector<8x128xf32>
    %593 = arith.maximumf %587, %592 : vector<8x128xf32>
    %594 = vector.extract_strided_slice %10 {offsets = [97, 0], sizes = [1, 128], strides = [1, 1]} : vector<128x128xf32> to vector<1x128xf32>
    %595 = vector.extract_strided_slice %8 {offsets = [0, 97], sizes = [8, 1], strides = [1, 1]} : vector<8x128xf32> to vector<8x1xf32>
    %596 = vector.broadcast %594 : vector<1x128xf32> to vector<8x128xf32>
    %597 = vector.broadcast %595 : vector<8x1xf32> to vector<8x128xf32>
    %598 = arith.addf %596, %597 : vector<8x128xf32>
    %599 = arith.maximumf %593, %598 : vector<8x128xf32>
    %600 = vector.extract_strided_slice %10 {offsets = [98, 0], sizes = [1, 128], strides = [1, 1]} : vector<128x128xf32> to vector<1x128xf32>
    %601 = vector.extract_strided_slice %8 {offsets = [0, 98], sizes = [8, 1], strides = [1, 1]} : vector<8x128xf32> to vector<8x1xf32>
    %602 = vector.broadcast %600 : vector<1x128xf32> to vector<8x128xf32>
    %603 = vector.broadcast %601 : vector<8x1xf32> to vector<8x128xf32>
    %604 = arith.addf %602, %603 : vector<8x128xf32>
    %605 = arith.maximumf %599, %604 : vector<8x128xf32>
    %606 = vector.extract_strided_slice %10 {offsets = [99, 0], sizes = [1, 128], strides = [1, 1]} : vector<128x128xf32> to vector<1x128xf32>
    %607 = vector.extract_strided_slice %8 {offsets = [0, 99], sizes = [8, 1], strides = [1, 1]} : vector<8x128xf32> to vector<8x1xf32>
    %608 = vector.broadcast %606 : vector<1x128xf32> to vector<8x128xf32>
    %609 = vector.broadcast %607 : vector<8x1xf32> to vector<8x128xf32>
    %610 = arith.addf %608, %609 : vector<8x128xf32>
    %611 = arith.maximumf %605, %610 : vector<8x128xf32>
    %612 = vector.extract_strided_slice %10 {offsets = [100, 0], sizes = [1, 128], strides = [1, 1]} : vector<128x128xf32> to vector<1x128xf32>
    %613 = vector.extract_strided_slice %8 {offsets = [0, 100], sizes = [8, 1], strides = [1, 1]} : vector<8x128xf32> to vector<8x1xf32>
    %614 = vector.broadcast %612 : vector<1x128xf32> to vector<8x128xf32>
    %615 = vector.broadcast %613 : vector<8x1xf32> to vector<8x128xf32>
    %616 = arith.addf %614, %615 : vector<8x128xf32>
    %617 = arith.maximumf %611, %616 : vector<8x128xf32>
    %618 = vector.extract_strided_slice %10 {offsets = [101, 0], sizes = [1, 128], strides = [1, 1]} : vector<128x128xf32> to vector<1x128xf32>
    %619 = vector.extract_strided_slice %8 {offsets = [0, 101], sizes = [8, 1], strides = [1, 1]} : vector<8x128xf32> to vector<8x1xf32>
    %620 = vector.broadcast %618 : vector<1x128xf32> to vector<8x128xf32>
    %621 = vector.broadcast %619 : vector<8x1xf32> to vector<8x128xf32>
    %622 = arith.addf %620, %621 : vector<8x128xf32>
    %623 = arith.maximumf %617, %622 : vector<8x128xf32>
    %624 = vector.extract_strided_slice %10 {offsets = [102, 0], sizes = [1, 128], strides = [1, 1]} : vector<128x128xf32> to vector<1x128xf32>
    %625 = vector.extract_strided_slice %8 {offsets = [0, 102], sizes = [8, 1], strides = [1, 1]} : vector<8x128xf32> to vector<8x1xf32>
    %626 = vector.broadcast %624 : vector<1x128xf32> to vector<8x128xf32>
    %627 = vector.broadcast %625 : vector<8x1xf32> to vector<8x128xf32>
    %628 = arith.addf %626, %627 : vector<8x128xf32>
    %629 = arith.maximumf %623, %628 : vector<8x128xf32>
    %630 = vector.extract_strided_slice %10 {offsets = [103, 0], sizes = [1, 128], strides = [1, 1]} : vector<128x128xf32> to vector<1x128xf32>
    %631 = vector.extract_strided_slice %8 {offsets = [0, 103], sizes = [8, 1], strides = [1, 1]} : vector<8x128xf32> to vector<8x1xf32>
    %632 = vector.broadcast %630 : vector<1x128xf32> to vector<8x128xf32>
    %633 = vector.broadcast %631 : vector<8x1xf32> to vector<8x128xf32>
    %634 = arith.addf %632, %633 : vector<8x128xf32>
    %635 = arith.maximumf %629, %634 : vector<8x128xf32>
    %636 = vector.extract_strided_slice %10 {offsets = [104, 0], sizes = [1, 128], strides = [1, 1]} : vector<128x128xf32> to vector<1x128xf32>
    %637 = vector.extract_strided_slice %8 {offsets = [0, 104], sizes = [8, 1], strides = [1, 1]} : vector<8x128xf32> to vector<8x1xf32>
    %638 = vector.broadcast %636 : vector<1x128xf32> to vector<8x128xf32>
    %639 = vector.broadcast %637 : vector<8x1xf32> to vector<8x128xf32>
    %640 = arith.addf %638, %639 : vector<8x128xf32>
    %641 = arith.maximumf %635, %640 : vector<8x128xf32>
    %642 = vector.extract_strided_slice %10 {offsets = [105, 0], sizes = [1, 128], strides = [1, 1]} : vector<128x128xf32> to vector<1x128xf32>
    %643 = vector.extract_strided_slice %8 {offsets = [0, 105], sizes = [8, 1], strides = [1, 1]} : vector<8x128xf32> to vector<8x1xf32>
    %644 = vector.broadcast %642 : vector<1x128xf32> to vector<8x128xf32>
    %645 = vector.broadcast %643 : vector<8x1xf32> to vector<8x128xf32>
    %646 = arith.addf %644, %645 : vector<8x128xf32>
    %647 = arith.maximumf %641, %646 : vector<8x128xf32>
    %648 = vector.extract_strided_slice %10 {offsets = [106, 0], sizes = [1, 128], strides = [1, 1]} : vector<128x128xf32> to vector<1x128xf32>
    %649 = vector.extract_strided_slice %8 {offsets = [0, 106], sizes = [8, 1], strides = [1, 1]} : vector<8x128xf32> to vector<8x1xf32>
    %650 = vector.broadcast %648 : vector<1x128xf32> to vector<8x128xf32>
    %651 = vector.broadcast %649 : vector<8x1xf32> to vector<8x128xf32>
    %652 = arith.addf %650, %651 : vector<8x128xf32>
    %653 = arith.maximumf %647, %652 : vector<8x128xf32>
    %654 = vector.extract_strided_slice %10 {offsets = [107, 0], sizes = [1, 128], strides = [1, 1]} : vector<128x128xf32> to vector<1x128xf32>
    %655 = vector.extract_strided_slice %8 {offsets = [0, 107], sizes = [8, 1], strides = [1, 1]} : vector<8x128xf32> to vector<8x1xf32>
    %656 = vector.broadcast %654 : vector<1x128xf32> to vector<8x128xf32>
    %657 = vector.broadcast %655 : vector<8x1xf32> to vector<8x128xf32>
    %658 = arith.addf %656, %657 : vector<8x128xf32>
    %659 = arith.maximumf %653, %658 : vector<8x128xf32>
    %660 = vector.extract_strided_slice %10 {offsets = [108, 0], sizes = [1, 128], strides = [1, 1]} : vector<128x128xf32> to vector<1x128xf32>
    %661 = vector.extract_strided_slice %8 {offsets = [0, 108], sizes = [8, 1], strides = [1, 1]} : vector<8x128xf32> to vector<8x1xf32>
    %662 = vector.broadcast %660 : vector<1x128xf32> to vector<8x128xf32>
    %663 = vector.broadcast %661 : vector<8x1xf32> to vector<8x128xf32>
    %664 = arith.addf %662, %663 : vector<8x128xf32>
    %665 = arith.maximumf %659, %664 : vector<8x128xf32>
    %666 = vector.extract_strided_slice %10 {offsets = [109, 0], sizes = [1, 128], strides = [1, 1]} : vector<128x128xf32> to vector<1x128xf32>
    %667 = vector.extract_strided_slice %8 {offsets = [0, 109], sizes = [8, 1], strides = [1, 1]} : vector<8x128xf32> to vector<8x1xf32>
    %668 = vector.broadcast %666 : vector<1x128xf32> to vector<8x128xf32>
    %669 = vector.broadcast %667 : vector<8x1xf32> to vector<8x128xf32>
    %670 = arith.addf %668, %669 : vector<8x128xf32>
    %671 = arith.maximumf %665, %670 : vector<8x128xf32>
    %672 = vector.extract_strided_slice %10 {offsets = [110, 0], sizes = [1, 128], strides = [1, 1]} : vector<128x128xf32> to vector<1x128xf32>
    %673 = vector.extract_strided_slice %8 {offsets = [0, 110], sizes = [8, 1], strides = [1, 1]} : vector<8x128xf32> to vector<8x1xf32>
    %674 = vector.broadcast %672 : vector<1x128xf32> to vector<8x128xf32>
    %675 = vector.broadcast %673 : vector<8x1xf32> to vector<8x128xf32>
    %676 = arith.addf %674, %675 : vector<8x128xf32>
    %677 = arith.maximumf %671, %676 : vector<8x128xf32>
    %678 = vector.extract_strided_slice %10 {offsets = [111, 0], sizes = [1, 128], strides = [1, 1]} : vector<128x128xf32> to vector<1x128xf32>
    %679 = vector.extract_strided_slice %8 {offsets = [0, 111], sizes = [8, 1], strides = [1, 1]} : vector<8x128xf32> to vector<8x1xf32>
    %680 = vector.broadcast %678 : vector<1x128xf32> to vector<8x128xf32>
    %681 = vector.broadcast %679 : vector<8x1xf32> to vector<8x128xf32>
    %682 = arith.addf %680, %681 : vector<8x128xf32>
    %683 = arith.maximumf %677, %682 : vector<8x128xf32>
    %684 = vector.extract_strided_slice %10 {offsets = [112, 0], sizes = [1, 128], strides = [1, 1]} : vector<128x128xf32> to vector<1x128xf32>
    %685 = vector.extract_strided_slice %8 {offsets = [0, 112], sizes = [8, 1], strides = [1, 1]} : vector<8x128xf32> to vector<8x1xf32>
    %686 = vector.broadcast %684 : vector<1x128xf32> to vector<8x128xf32>
    %687 = vector.broadcast %685 : vector<8x1xf32> to vector<8x128xf32>
    %688 = arith.addf %686, %687 : vector<8x128xf32>
    %689 = arith.maximumf %683, %688 : vector<8x128xf32>
    %690 = vector.extract_strided_slice %10 {offsets = [113, 0], sizes = [1, 128], strides = [1, 1]} : vector<128x128xf32> to vector<1x128xf32>
    %691 = vector.extract_strided_slice %8 {offsets = [0, 113], sizes = [8, 1], strides = [1, 1]} : vector<8x128xf32> to vector<8x1xf32>
    %692 = vector.broadcast %690 : vector<1x128xf32> to vector<8x128xf32>
    %693 = vector.broadcast %691 : vector<8x1xf32> to vector<8x128xf32>
    %694 = arith.addf %692, %693 : vector<8x128xf32>
    %695 = arith.maximumf %689, %694 : vector<8x128xf32>
    %696 = vector.extract_strided_slice %10 {offsets = [114, 0], sizes = [1, 128], strides = [1, 1]} : vector<128x128xf32> to vector<1x128xf32>
    %697 = vector.extract_strided_slice %8 {offsets = [0, 114], sizes = [8, 1], strides = [1, 1]} : vector<8x128xf32> to vector<8x1xf32>
    %698 = vector.broadcast %696 : vector<1x128xf32> to vector<8x128xf32>
    %699 = vector.broadcast %697 : vector<8x1xf32> to vector<8x128xf32>
    %700 = arith.addf %698, %699 : vector<8x128xf32>
    %701 = arith.maximumf %695, %700 : vector<8x128xf32>
    %702 = vector.extract_strided_slice %10 {offsets = [115, 0], sizes = [1, 128], strides = [1, 1]} : vector<128x128xf32> to vector<1x128xf32>
    %703 = vector.extract_strided_slice %8 {offsets = [0, 115], sizes = [8, 1], strides = [1, 1]} : vector<8x128xf32> to vector<8x1xf32>
    %704 = vector.broadcast %702 : vector<1x128xf32> to vector<8x128xf32>
    %705 = vector.broadcast %703 : vector<8x1xf32> to vector<8x128xf32>
    %706 = arith.addf %704, %705 : vector<8x128xf32>
    %707 = arith.maximumf %701, %706 : vector<8x128xf32>
    %708 = vector.extract_strided_slice %10 {offsets = [116, 0], sizes = [1, 128], strides = [1, 1]} : vector<128x128xf32> to vector<1x128xf32>
    %709 = vector.extract_strided_slice %8 {offsets = [0, 116], sizes = [8, 1], strides = [1, 1]} : vector<8x128xf32> to vector<8x1xf32>
    %710 = vector.broadcast %708 : vector<1x128xf32> to vector<8x128xf32>
    %711 = vector.broadcast %709 : vector<8x1xf32> to vector<8x128xf32>
    %712 = arith.addf %710, %711 : vector<8x128xf32>
    %713 = arith.maximumf %707, %712 : vector<8x128xf32>
    %714 = vector.extract_strided_slice %10 {offsets = [117, 0], sizes = [1, 128], strides = [1, 1]} : vector<128x128xf32> to vector<1x128xf32>
    %715 = vector.extract_strided_slice %8 {offsets = [0, 117], sizes = [8, 1], strides = [1, 1]} : vector<8x128xf32> to vector<8x1xf32>
    %716 = vector.broadcast %714 : vector<1x128xf32> to vector<8x128xf32>
    %717 = vector.broadcast %715 : vector<8x1xf32> to vector<8x128xf32>
    %718 = arith.addf %716, %717 : vector<8x128xf32>
    %719 = arith.maximumf %713, %718 : vector<8x128xf32>
    %720 = vector.extract_strided_slice %10 {offsets = [118, 0], sizes = [1, 128], strides = [1, 1]} : vector<128x128xf32> to vector<1x128xf32>
    %721 = vector.extract_strided_slice %8 {offsets = [0, 118], sizes = [8, 1], strides = [1, 1]} : vector<8x128xf32> to vector<8x1xf32>
    %722 = vector.broadcast %720 : vector<1x128xf32> to vector<8x128xf32>
    %723 = vector.broadcast %721 : vector<8x1xf32> to vector<8x128xf32>
    %724 = arith.addf %722, %723 : vector<8x128xf32>
    %725 = arith.maximumf %719, %724 : vector<8x128xf32>
    %726 = vector.extract_strided_slice %10 {offsets = [119, 0], sizes = [1, 128], strides = [1, 1]} : vector<128x128xf32> to vector<1x128xf32>
    %727 = vector.extract_strided_slice %8 {offsets = [0, 119], sizes = [8, 1], strides = [1, 1]} : vector<8x128xf32> to vector<8x1xf32>
    %728 = vector.broadcast %726 : vector<1x128xf32> to vector<8x128xf32>
    %729 = vector.broadcast %727 : vector<8x1xf32> to vector<8x128xf32>
    %730 = arith.addf %728, %729 : vector<8x128xf32>
    %731 = arith.maximumf %725, %730 : vector<8x128xf32>
    %732 = vector.extract_strided_slice %10 {offsets = [120, 0], sizes = [1, 128], strides = [1, 1]} : vector<128x128xf32> to vector<1x128xf32>
    %733 = vector.extract_strided_slice %8 {offsets = [0, 120], sizes = [8, 1], strides = [1, 1]} : vector<8x128xf32> to vector<8x1xf32>
    %734 = vector.broadcast %732 : vector<1x128xf32> to vector<8x128xf32>
    %735 = vector.broadcast %733 : vector<8x1xf32> to vector<8x128xf32>
    %736 = arith.addf %734, %735 : vector<8x128xf32>
    %737 = arith.maximumf %731, %736 : vector<8x128xf32>
    %738 = vector.extract_strided_slice %10 {offsets = [121, 0], sizes = [1, 128], strides = [1, 1]} : vector<128x128xf32> to vector<1x128xf32>
    %739 = vector.extract_strided_slice %8 {offsets = [0, 121], sizes = [8, 1], strides = [1, 1]} : vector<8x128xf32> to vector<8x1xf32>
    %740 = vector.broadcast %738 : vector<1x128xf32> to vector<8x128xf32>
    %741 = vector.broadcast %739 : vector<8x1xf32> to vector<8x128xf32>
    %742 = arith.addf %740, %741 : vector<8x128xf32>
    %743 = arith.maximumf %737, %742 : vector<8x128xf32>
    %744 = vector.extract_strided_slice %10 {offsets = [122, 0], sizes = [1, 128], strides = [1, 1]} : vector<128x128xf32> to vector<1x128xf32>
    %745 = vector.extract_strided_slice %8 {offsets = [0, 122], sizes = [8, 1], strides = [1, 1]} : vector<8x128xf32> to vector<8x1xf32>
    %746 = vector.broadcast %744 : vector<1x128xf32> to vector<8x128xf32>
    %747 = vector.broadcast %745 : vector<8x1xf32> to vector<8x128xf32>
    %748 = arith.addf %746, %747 : vector<8x128xf32>
    %749 = arith.maximumf %743, %748 : vector<8x128xf32>
    %750 = vector.extract_strided_slice %10 {offsets = [123, 0], sizes = [1, 128], strides = [1, 1]} : vector<128x128xf32> to vector<1x128xf32>
    %751 = vector.extract_strided_slice %8 {offsets = [0, 123], sizes = [8, 1], strides = [1, 1]} : vector<8x128xf32> to vector<8x1xf32>
    %752 = vector.broadcast %750 : vector<1x128xf32> to vector<8x128xf32>
    %753 = vector.broadcast %751 : vector<8x1xf32> to vector<8x128xf32>
    %754 = arith.addf %752, %753 : vector<8x128xf32>
    %755 = arith.maximumf %749, %754 : vector<8x128xf32>
    %756 = vector.extract_strided_slice %10 {offsets = [124, 0], sizes = [1, 128], strides = [1, 1]} : vector<128x128xf32> to vector<1x128xf32>
    %757 = vector.extract_strided_slice %8 {offsets = [0, 124], sizes = [8, 1], strides = [1, 1]} : vector<8x128xf32> to vector<8x1xf32>
    %758 = vector.broadcast %756 : vector<1x128xf32> to vector<8x128xf32>
    %759 = vector.broadcast %757 : vector<8x1xf32> to vector<8x128xf32>
    %760 = arith.addf %758, %759 : vector<8x128xf32>
    %761 = arith.maximumf %755, %760 : vector<8x128xf32>
    %762 = vector.extract_strided_slice %10 {offsets = [125, 0], sizes = [1, 128], strides = [1, 1]} : vector<128x128xf32> to vector<1x128xf32>
    %763 = vector.extract_strided_slice %8 {offsets = [0, 125], sizes = [8, 1], strides = [1, 1]} : vector<8x128xf32> to vector<8x1xf32>
    %764 = vector.broadcast %762 : vector<1x128xf32> to vector<8x128xf32>
    %765 = vector.broadcast %763 : vector<8x1xf32> to vector<8x128xf32>
    %766 = arith.addf %764, %765 : vector<8x128xf32>
    %767 = arith.maximumf %761, %766 : vector<8x128xf32>
    %768 = vector.extract_strided_slice %10 {offsets = [126, 0], sizes = [1, 128], strides = [1, 1]} : vector<128x128xf32> to vector<1x128xf32>
    %769 = vector.extract_strided_slice %8 {offsets = [0, 126], sizes = [8, 1], strides = [1, 1]} : vector<8x128xf32> to vector<8x1xf32>
    %770 = vector.broadcast %768 : vector<1x128xf32> to vector<8x128xf32>
    %771 = vector.broadcast %769 : vector<8x1xf32> to vector<8x128xf32>
    %772 = arith.addf %770, %771 : vector<8x128xf32>
    %773 = arith.maximumf %767, %772 : vector<8x128xf32>
    %774 = vector.extract_strided_slice %10 {offsets = [127, 0], sizes = [1, 128], strides = [1, 1]} : vector<128x128xf32> to vector<1x128xf32>
    %775 = vector.extract_strided_slice %8 {offsets = [0, 127], sizes = [8, 1], strides = [1, 1]} : vector<8x128xf32> to vector<8x1xf32>
    %776 = vector.broadcast %774 : vector<1x128xf32> to vector<8x128xf32>
    %777 = vector.broadcast %775 : vector<8x1xf32> to vector<8x128xf32>
    %778 = arith.addf %776, %777 : vector<8x128xf32>
    %779 = arith.maximumf %773, %778 : vector<8x128xf32>
    %c0_7 = arith.constant 0 : index
    %c0_8 = arith.constant 0 : index
    %780 = vector.load %arg6[%c0_7, %c0_8] : memref<8x128xf32, #tpu.memory_space<vmem>>, vector<8x128xf32>
    tpu.vector_store %arg6[%c0_7, %c0_8], %779 {strides = array<i32>} : memref<8x128xf32, #tpu.memory_space<vmem>>, vector<8x128xf32>,
    %c0_i32_9 = arith.constant 0 : i32
    %781 = arith.cmpi eq, %arg2, %c0_i32_9 : i32
    %782 = arith.extui %781 : i1 to i32
    %c0_i32_10 = arith.constant 0 : i32
    %783 = arith.cmpi ne, %782, %c0_i32_10 : i32
    scf.if %783 {
      %c0_11 = arith.constant 0 : index
      %c0_12 = arith.constant 0 : index
      %784 = vector.load %arg6[%c0_11, %c0_12] : memref<8x128xf32, #tpu.memory_space<vmem>>, vector<8x128xf32>
      %cst_13 = arith.constant -1.000000e+30 : f32
      %785 = vector.broadcast %cst_13 : f32 to vector<8x128xf32>
      %786 = arith.cmpf ogt, %784, %785 : vector<8x128xf32>
      %cst_14 = arith.constant 0.000000e+00 : f32
      %787 = vector.broadcast %cst_14 : f32 to vector<8x128xf32>
      %788 = arith.select %786, %784, %787 : vector<8x128xi1>, vector<8x128xf32>
      %c0_15 = arith.constant 0 : index
      %c0_16 = arith.constant 0 : index
      %789 = vector.load %arg5[%c0_15, %c0_16] : memref<8x128xf32, #tpu.memory_space<vmem>>, vector<8x128xf32>
      tpu.vector_store %arg5[%c0_15, %c0_16], %788 {strides = array<i32>} : memref<8x128xf32, #tpu.memory_space<vmem>>, vector<8x128xf32>,
    } else {
    }
    return
  }
  func.func @transform_0(%arg0: i32, %arg1: i32, %arg2: i32) -> (i32, i32) {
    %c0_i32 = arith.constant 0 : i32
    return %arg0, %arg2 : i32, i32
  }
  func.func @transform_1(%arg0: i32, %arg1: i32, %arg2: i32) -> (i32, i32) {
    %c0_i32 = arith.constant 0 : i32
    return %arg2, %arg1 : i32, i32
  }
  func.func @transform_2(%arg0: i32, %arg1: i32, %arg2: i32) -> (i32, i32) {
    %c0_i32 = arith.constant 0 : i32
    return %arg0, %arg1 : i32, i32
  }
}

</mosaic_0001>

<llo_original>
// kernel: tpu_custom_call.1
$region0: #{tpu_custom_call.1}
  #allocation0 [shape = 'u32[]', space=smem, size = 0x4, offset = 0x4, fixed_abs, tag = 'smem constant byte address 0x4 - core index']
  #allocation1 [shape = 'u32[144,128]{1,0:T(1,128)}', space=vmem, size = 0x12000, scoped, tag = 'internal scratch']
  #allocation2 [shape = 'f32[8,128]{1,0:T(8,128)}', space=vmem, size = 0x1000, scoped, tag = 'scratch operand']
  %s0 = inlined_call_operand.hbm [shape: bf16[8,128], index: 0, kind: input, shape index: {}]
  %s1 = inlined_call_operand.hbm [shape: bf16[128,128], index: 1, kind: input, shape index: {}]
  %s2 = inlined_call_operand.hbm [shape: f32[8,128], index: 2, kind: output, shape index: {}]
  %s3 = sld [smem:[#allocation0]]
  $region34: #{tpu_custom_call.1} parent=0
    _
  %s5 = ssub.s32 1, %s3
  %s6 = scalar_select 0, %s5, %s3
  $region1: #{tpu_custom_call.1} parent=0
    #allocation3 [shape = 'u8[2048]{0}', space=vmem, size = 0x800, scoped, tag = 'input window, operand 0, single buffered']
    #allocation4 [shape = 's32[1]{0}', space=sflag, size = 0x4, scoped, tag = 'scoped memory for tpu_custom_call.1']
    #allocation5 [shape = 's32[1]{0}', space=sflag, size = 0x4, scoped, tag = 'scoped memory for tpu_custom_call.1']
    #allocation6 [shape = 'u8[32768]{0}', space=vmem, size = 0x8000, scoped, tag = 'input window, operand 1, single buffered']
    #allocation7 [shape = 's32[1]{0}', space=sflag, size = 0x4, scoped, tag = 'scoped memory for tpu_custom_call.1']
    #allocation8 [shape = 'u8[4096]{0}', space=vmem, size = 0x1000, scoped, tag = 'output window, operand 0, single buffered']
    %7 = vsyncpa [#allocation4], 0
    %8 = vsyncpa [#allocation7], 0
    %9 = vsyncpa [#allocation5], 0
    // Predicated region
    $region2: #{tpu_custom_call.1} parent=1 // pred_check
      _
    $region3: #{tpu_custom_call.1} parent=1 // pred_check_branch
      %11 = sbr.rel (0) target = $region5
    $region4: #{tpu_custom_call.1} parent=1 // pred_region
      %s13 = ssub.s32 64, 64
      %14 = vsyncadd [#allocation4], %s13
      %s16 = sshll.u32 [#allocation3], 4
      %s17 = int_to_ptr.vmem [resolvable:$true] %s16
      %19 = dma.hbm_to_vmem [thread:$0]  %s0, 64, %s17, [#allocation4]
    $region5: #{tpu_custom_call.1} parent=1 // pred_fallthru
      _
    // Predicated region
    $region6: #{tpu_custom_call.1} parent=1 // pred_check
      _
    $region7: #{tpu_custom_call.1} parent=1 // pred_check_branch
      %21 = sbr.rel (0) target = $region9
    $region8: #{tpu_custom_call.1} parent=1 // pred_region
      %s23 = ssub.s32 1024, 1024
      %24 = vsyncadd [#allocation7], %s23
      %s25 = sshll.u32 [#allocation6], 4
      %s26 = int_to_ptr.vmem [resolvable:$true] %s25
      %31 = dma.hbm_to_vmem [thread:$0]  %s1, 1024, %s26, [#allocation7], 64, 64, 4
    $region9: #{tpu_custom_call.1} parent=1 // pred_fallthru
      _
    // Predicated region
    $region10: #{tpu_custom_call.1} parent=1 // pred_check
      _
    $region11: #{tpu_custom_call.1} parent=1 // pred_check_branch
      %33 = sbr.rel (0) target = $region13
    $region12: #{tpu_custom_call.1} parent=1 // pred_region
      %34 = dma.done [#allocation4], 64
    $region13: #{tpu_custom_call.1} parent=1 // pred_fallthru
      _
    // Predicated region
    $region14: #{tpu_custom_call.1} parent=1 // pred_check
      _
    $region15: #{tpu_custom_call.1} parent=1 // pred_check_branch
      %36 = sbr.rel (0) target = $region17
    $region16: #{tpu_custom_call.1} parent=1 // pred_region
      %37 = dma.done [#allocation7], 1024
    $region17: #{tpu_custom_call.1} parent=1 // pred_fallthru
      _
    %p38 = scmp.eq.s32.totalorder 0, 0
    // Predicated region
    $region18: #{tpu_custom_call.1} parent=1 // pred_check
      %p39 = pneg %p38
    $region19: #{tpu_custom_call.1} parent=1 // pred_check_branch
      %41 = sbr.rel (%p39) target = $region21
    $region20: #{tpu_custom_call.1} parent=1 // pred_region
      %42 = vst [vmem:[#allocation2] sm:$0xff] -3e+38
    $region21: #{tpu_custom_call.1} parent=1 // pred_fallthru
      _
    %v43 = vld [vmem:[#allocation3] sm:$0xf]
    %v44 = vunpack.c.l.bf16 %v43
    %v45 = vsub.f32 %v44, 1.0
    %v46 = vmul.f32 %v45, 3e+38
    %v47 = vld [vmem:[#allocation6] sm:$0xf]
    %v48 = vld [vmem:[#allocation6 + $0x4] sm:$0xf]
    %v49 = vld [vmem:[#allocation6 + $0x8] sm:$0xf]
    %v50 = vld [vmem:[#allocation6 + $0xc] sm:$0xf]
    %v51 = vld [vmem:[#allocation6 + $0x10] sm:$0xf]
    %v52 = vld [vmem:[#allocation6 + $0x14] sm:$0xf]
    %v53 = vld [vmem:[#allocation6 + $0x18] sm:$0xf]
    %v54 = vld [vmem:[#allocation6 + $0x1c] sm:$0xf]
    %v55 = vld [vmem:[#allocation6 + $0x20] sm:$0xf]
    %v56 = vld [vmem:[#allocation6 + $0x24] sm:$0xf]
    %v57 = vld [vmem:[#allocation6 + $0x28] sm:$0xf]
    %v58 = vld [vmem:[#allocation6 + $0x2c] sm:$0xf]
    %v59 = vld [vmem:[#allocation6 + $0x30] sm:$0xf]
    %v60 = vld [vmem:[#allocation6 + $0x34] sm:$0xf]
    %v61 = vld [vmem:[#allocation6 + $0x38] sm:$0xf]
    %v62 = vld [vmem:[#allocation6 + $0x3c] sm:$0xf]
    %v63 = vunpack.c.l.bf16 %v47
    %v64 = vunpack.c.l.bf16 %v48
    %v65 = vunpack.c.l.bf16 %v49
    %v66 = vunpack.c.l.bf16 %v50
    %v67 = vunpack.c.l.bf16 %v51
    %v68 = vunpack.c.l.bf16 %v52
    %v69 = vunpack.c.l.bf16 %v53
    %v70 = vunpack.c.l.bf16 %v54
    %v71 = vunpack.c.l.bf16 %v55
    %v72 = vunpack.c.l.bf16 %v56
    %v73 = vunpack.c.l.bf16 %v57
    %v74 = vunpack.c.l.bf16 %v58
    %v75 = vunpack.c.l.bf16 %v59
    %v76 = vunpack.c.l.bf16 %v60
    %v77 = vunpack.c.l.bf16 %v61
    %v78 = vunpack.c.l.bf16 %v62
    %v79 = vld [vmem:[#allocation2] sm:$0xff]
    %v80 = vlaneseq
    %v81 = vshrl.u32 %v80, 7
    %v82 = vsub.s32 0, %v81
    %v83 = vrot.slane %v63, %v82
    %85 = vset.pattern.permute.xlu0 0
    %86 = vperm.xlu0 %85, %v46
    %v87 = vpop.permute.xlu0 %86
    %v89 = vadd.f32 %v83, %v87
    %v90 = vmax.f32 %v79, %v89
    %v91 = vlaneseq
    %v92 = vshrl.u32 %v91, 7
    %v93 = vsub.s32 1, %v92
    %v94 = vrot.slane %v63, %v93
    %95 = vset.pattern.permute.xlu0 1
    %96 = vperm.xlu0 %95, %v46
    %v97 = vpop.permute.xlu0 %96
    %v99 = vadd.f32 %v94, %v97
    %v100 = vmax.f32 %v90, %v99
    %v101 = vlaneseq
    %v102 = vshrl.u32 %v101, 7
    %v103 = vsub.s32 2, %v102
    %v104 = vrot.slane %v63, %v103
    %105 = vset.pattern.permute.xlu0 2
    %106 = vperm.xlu0 %105, %v46
    %v107 = vpop.permute.xlu0 %106
    %v109 = vadd.f32 %v104, %v107
    %v110 = vmax.f32 %v100, %v109
    %v111 = vlaneseq
    %v112 = vshrl.u32 %v111, 7
    %v113 = vsub.s32 3, %v112
    %v114 = vrot.slane %v63, %v113
    %115 = vset.pattern.permute.xlu0 3
    %116 = vperm.xlu0 %115, %v46
    %v117 = vpop.permute.xlu0 %116
    %v119 = vadd.f32 %v114, %v117
    %v120 = vmax.f32 %v110, %v119
    %v121 = vlaneseq
    %v122 = vshrl.u32 %v121, 7
    %v123 = vsub.s32 4, %v122
    %v124 = vrot.slane %v63, %v123
    %125 = vset.pattern.permute.xlu0 4
    %126 = vperm.xlu0 %125, %v46
    %v127 = vpop.permute.xlu0 %126
    %v129 = vadd.f32 %v124, %v127
    %v130 = vmax.f32 %v120, %v129
    %v131 = vlaneseq
    %v132 = vshrl.u32 %v131, 7
    %v133 = vsub.s32 5, %v132
    %v134 = vrot.slane %v63, %v133
    %135 = vset.pattern.permute.xlu0 5
    %136 = vperm.xlu0 %135, %v46
    %v137 = vpop.permute.xlu0 %136
    %v139 = vadd.f32 %v134, %v137
    %v140 = vmax.f32 %v130, %v139
    %v141 = vlaneseq
    %v142 = vshrl.u32 %v141, 7
    %v143 = vsub.s32 6, %v142
    %v144 = vrot.slane %v63, %v143
    %145 = vset.pattern.permute.xlu0 6
    %146 = vperm.xlu0 %145, %v46
    %v147 = vpop.permute.xlu0 %146
    %v149 = vadd.f32 %v144, %v147
    %v150 = vmax.f32 %v140, %v149
    %v151 = vlaneseq
    %v152 = vshrl.u32 %v151, 7
    %v153 = vsub.s32 7, %v152
    %v154 = vrot.slane %v63, %v153
    %155 = vset.pattern.permute.xlu0 7
    %156 = vperm.xlu0 %155, %v46
    %v157 = vpop.permute.xlu0 %156
    %v159 = vadd.f32 %v154, %v157
    %v160 = vmax.f32 %v150, %v159
    %v161 = vlaneseq
    %v162 = vshrl.u32 %v161, 7
    %v163 = vsub.s32 0, %v162
    %v164 = vrot.slane %v64, %v163
    %165 = vset.pattern.permute.xlu0 8
    %166 = vperm.xlu0 %165, %v46
    %v167 = vpop.permute.xlu0 %166
    %v169 = vadd.f32 %v164, %v167
    %v170 = vmax.f32 %v160, %v169
    %v171 = vlaneseq
    %v172 = vshrl.u32 %v171, 7
    %v173 = vsub.s32 1, %v172
    %v174 = vrot.slane %v64, %v173
    %175 = vset.pattern.permute.xlu0 9
    %176 = vperm.xlu0 %175, %v46
    %v177 = vpop.permute.xlu0 %176
    %v179 = vadd.f32 %v174, %v177
    %v180 = vmax.f32 %v170, %v179
    %v181 = vlaneseq
    %v182 = vshrl.u32 %v181, 7
    %v183 = vsub.s32 2, %v182
    %v184 = vrot.slane %v64, %v183
    %185 = vset.pattern.permute.xlu0 10
    %186 = vperm.xlu0 %185, %v46
    %v187 = vpop.permute.xlu0 %186
    %v189 = vadd.f32 %v184, %v187
    %v190 = vmax.f32 %v180, %v189
    %v191 = vlaneseq
    %v192 = vshrl.u32 %v191, 7
    %v193 = vsub.s32 3, %v192
    %v194 = vrot.slane %v64, %v193
    %195 = vset.pattern.permute.xlu0 11
    %196 = vperm.xlu0 %195, %v46
    %v197 = vpop.permute.xlu0 %196
    %v199 = vadd.f32 %v194, %v197
    %v200 = vmax.f32 %v190, %v199
    %v201 = vlaneseq
    %v202 = vshrl.u32 %v201, 7
    %v203 = vsub.s32 4, %v202
    %v204 = vrot.slane %v64, %v203
    %205 = vset.pattern.permute.xlu0 12
    %206 = vperm.xlu0 %205, %v46
    %v207 = vpop.permute.xlu0 %206
    %v209 = vadd.f32 %v204, %v207
    %v210 = vmax.f32 %v200, %v209
    %v211 = vlaneseq
    %v212 = vshrl.u32 %v211, 7
    %v213 = vsub.s32 5, %v212
    %v214 = vrot.slane %v64, %v213
    %215 = vset.pattern.permute.xlu0 13
    %216 = vperm.xlu0 %215, %v46
    %v217 = vpop.permute.xlu0 %216
    %v219 = vadd.f32 %v214, %v217
    %v220 = vmax.f32 %v210, %v219
    %v221 = vlaneseq
    %v222 = vshrl.u32 %v221, 7
    %v223 = vsub.s32 6, %v222
    %v224 = vrot.slane %v64, %v223
    %225 = vset.pattern.permute.xlu0 14
    %226 = vperm.xlu0 %225, %v46
    %v227 = vpop.permute.xlu0 %226
    %v229 = vadd.f32 %v224, %v227
    %v230 = vmax.f32 %v220, %v229
    %v231 = vlaneseq
    %v232 = vshrl.u32 %v231, 7
    %v233 = vsub.s32 7, %v232
    %v234 = vrot.slane %v64, %v233
    %235 = vset.pattern.permute.xlu0 15
    %236 = vperm.xlu0 %235, %v46
    %v237 = vpop.permute.xlu0 %236
    %v239 = vadd.f32 %v234, %v237
    %v240 = vmax.f32 %v230, %v239
    %v241 = vlaneseq
    %v242 = vshrl.u32 %v241, 7
    %v243 = vsub.s32 0, %v242
    %v244 = vrot.slane %v65, %v243
    %245 = vset.pattern.permute.xlu0 16
    %246 = vperm.xlu0 %245, %v46
    %v247 = vpop.permute.xlu0 %246
    %v249 = vadd.f32 %v244, %v247
    %v250 = vmax.f32 %v240, %v249
    %v251 = vlaneseq
    %v252 = vshrl.u32 %v251, 7
    %v253 = vsub.s32 1, %v252
    %v254 = vrot.slane %v65, %v253
    %255 = vset.pattern.permute.xlu0 17
    %256 = vperm.xlu0 %255, %v46
    %v257 = vpop.permute.xlu0 %256
    %v259 = vadd.f32 %v254, %v257
    %v260 = vmax.f32 %v250, %v259
    %v261 = vlaneseq
    %v262 = vshrl.u32 %v261, 7
    %v263 = vsub.s32 2, %v262
    %v264 = vrot.slane %v65, %v263
    %265 = vset.pattern.permute.xlu0 18
    %266 = vperm.xlu0 %265, %v46
    %v267 = vpop.permute.xlu0 %266
    %v269 = vadd.f32 %v264, %v267
    %v270 = vmax.f32 %v260, %v269
    %v271 = vlaneseq
    %v272 = vshrl.u32 %v271, 7
    %v273 = vsub.s32 3, %v272
    %v274 = vrot.slane %v65, %v273
    %275 = vset.pattern.permute.xlu0 19
    %276 = vperm.xlu0 %275, %v46
    %v277 = vpop.permute.xlu0 %276
    %v279 = vadd.f32 %v274, %v277
    %v280 = vmax.f32 %v270, %v279
    %v281 = vlaneseq
    %v282 = vshrl.u32 %v281, 7
    %v283 = vsub.s32 4, %v282
    %v284 = vrot.slane %v65, %v283
    %285 = vset.pattern.permute.xlu0 20
    %286 = vperm.xlu0 %285, %v46
    %v287 = vpop.permute.xlu0 %286
    %v289 = vadd.f32 %v284, %v287
    %v290 = vmax.f32 %v280, %v289
    %v291 = vlaneseq
    %v292 = vshrl.u32 %v291, 7
    %v293 = vsub.s32 5, %v292
    %v294 = vrot.slane %v65, %v293
    %295 = vset.pattern.permute.xlu0 21
    %296 = vperm.xlu0 %295, %v46
    %v297 = vpop.permute.xlu0 %296
    %v299 = vadd.f32 %v294, %v297
    %v300 = vmax.f32 %v290, %v299
    %v301 = vlaneseq
    %v302 = vshrl.u32 %v301, 7
    %v303 = vsub.s32 6, %v302
    %v304 = vrot.slane %v65, %v303
    %305 = vset.pattern.permute.xlu0 22
    %306 = vperm.xlu0 %305, %v46
    %v307 = vpop.permute.xlu0 %306
    %v309 = vadd.f32 %v304, %v307
    %v310 = vmax.f32 %v300, %v309
    %v311 = vlaneseq
    %v312 = vshrl.u32 %v311, 7
    %v313 = vsub.s32 7, %v312
    %v314 = vrot.slane %v65, %v313
    %315 = vset.pattern.permute.xlu0 23
    %316 = vperm.xlu0 %315, %v46
    %v317 = vpop.permute.xlu0 %316
    %v319 = vadd.f32 %v314, %v317
    %v320 = vmax.f32 %v310, %v319
    %v321 = vlaneseq
    %v322 = vshrl.u32 %v321, 7
    %v323 = vsub.s32 0, %v322
    %v324 = vrot.slane %v66, %v323
    %325 = vset.pattern.permute.xlu0 24
    %326 = vperm.xlu0 %325, %v46
    %v327 = vpop.permute.xlu0 %326
    %v329 = vadd.f32 %v324, %v327
    %v330 = vmax.f32 %v320, %v329
    %v331 = vlaneseq
    %v332 = vshrl.u32 %v331, 7
    %v333 = vsub.s32 1, %v332
    %v334 = vrot.slane %v66, %v333
    %335 = vset.pattern.permute.xlu0 25
    %336 = vperm.xlu0 %335, %v46
    %v337 = vpop.permute.xlu0 %336
    %v339 = vadd.f32 %v334, %v337
    %v340 = vmax.f32 %v330, %v339
    %v341 = vlaneseq
    %v342 = vshrl.u32 %v341, 7
    %v343 = vsub.s32 2, %v342
    %v344 = vrot.slane %v66, %v343
    %345 = vset.pattern.permute.xlu0 26
    %346 = vperm.xlu0 %345, %v46
    %v347 = vpop.permute.xlu0 %346
    %v349 = vadd.f32 %v344, %v347
    %v350 = vmax.f32 %v340, %v349
    %v351 = vlaneseq
    %v352 = vshrl.u32 %v351, 7
    %v353 = vsub.s32 3, %v352
    %v354 = vrot.slane %v66, %v353
    %355 = vset.pattern.permute.xlu0 27
    %356 = vperm.xlu0 %355, %v46
    %v357 = vpop.permute.xlu0 %356
    %v359 = vadd.f32 %v354, %v357
    %v360 = vmax.f32 %v350, %v359
    %v361 = vlaneseq
    %v362 = vshrl.u32 %v361, 7
    %v363 = vsub.s32 4, %v362
    %v364 = vrot.slane %v66, %v363
    %365 = vset.pattern.permute.xlu0 28
    %366 = vperm.xlu0 %365, %v46
    %v367 = vpop.permute.xlu0 %366
    %v369 = vadd.f32 %v364, %v367
    %v370 = vmax.f32 %v360, %v369
    %v371 = vlaneseq
    %v372 = vshrl.u32 %v371, 7
    %v373 = vsub.s32 5, %v372
    %v374 = vrot.slane %v66, %v373
    %375 = vset.pattern.permute.xlu0 29
    %376 = vperm.xlu0 %375, %v46
    %v377 = vpop.permute.xlu0 %376
    %v379 = vadd.f32 %v374, %v377
    %v380 = vmax.f32 %v370, %v379
    %v381 = vlaneseq
    %v382 = vshrl.u32 %v381, 7
    %v383 = vsub.s32 6, %v382
    %v384 = vrot.slane %v66, %v383
    %385 = vset.pattern.permute.xlu0 30
    %386 = vperm.xlu0 %385, %v46
    %v387 = vpop.permute.xlu0 %386
    %v389 = vadd.f32 %v384, %v387
    %v390 = vmax.f32 %v380, %v389
    %v391 = vlaneseq
    %v392 = vshrl.u32 %v391, 7
    %v393 = vsub.s32 7, %v392
    %v394 = vrot.slane %v66, %v393
    %395 = vset.pattern.permute.xlu0 31
    %396 = vperm.xlu0 %395, %v46
    %v397 = vpop.permute.xlu0 %396
    %v399 = vadd.f32 %v394, %v397
    %v400 = vmax.f32 %v390, %v399
    %v401 = vlaneseq
    %v402 = vshrl.u32 %v401, 7
    %v403 = vsub.s32 0, %v402
    %v404 = vrot.slane %v67, %v403
    %405 = vset.pattern.permute.xlu0 32
    %406 = vperm.xlu0 %405, %v46
    %v407 = vpop.permute.xlu0 %406
    %v409 = vadd.f32 %v404, %v407
    %v410 = vmax.f32 %v400, %v409
    %v411 = vlaneseq
    %v412 = vshrl.u32 %v411, 7
    %v413 = vsub.s32 1, %v412
    %v414 = vrot.slane %v67, %v413
    %415 = vset.pattern.permute.xlu0 33
    %416 = vperm.xlu0 %415, %v46
    %v417 = vpop.permute.xlu0 %416
    %v419 = vadd.f32 %v414, %v417
    %v420 = vmax.f32 %v410, %v419
    %v421 = vlaneseq
    %v422 = vshrl.u32 %v421, 7
    %v423 = vsub.s32 2, %v422
    %v424 = vrot.slane %v67, %v423
    %425 = vset.pattern.permute.xlu0 34
    %426 = vperm.xlu0 %425, %v46
    %v427 = vpop.permute.xlu0 %426
    %v429 = vadd.f32 %v424, %v427
    %v430 = vmax.f32 %v420, %v429
    %v431 = vlaneseq
    %v432 = vshrl.u32 %v431, 7
    %v433 = vsub.s32 3, %v432
    %v434 = vrot.slane %v67, %v433
    %435 = vset.pattern.permute.xlu0 35
    %436 = vperm.xlu0 %435, %v46
    %v437 = vpop.permute.xlu0 %436
    %v439 = vadd.f32 %v434, %v437
    %v440 = vmax.f32 %v430, %v439
    %v441 = vlaneseq
    %v442 = vshrl.u32 %v441, 7
    %v443 = vsub.s32 4, %v442
    %v444 = vrot.slane %v67, %v443
    %445 = vset.pattern.permute.xlu0 36
    %446 = vperm.xlu0 %445, %v46
    %v447 = vpop.permute.xlu0 %446
    %v449 = vadd.f32 %v444, %v447
    %v450 = vmax.f32 %v440, %v449
    %v451 = vlaneseq
    %v452 = vshrl.u32 %v451, 7
    %v453 = vsub.s32 5, %v452
    %v454 = vrot.slane %v67, %v453
    %455 = vset.pattern.permute.xlu0 37
    %456 = vperm.xlu0 %455, %v46
    %v457 = vpop.permute.xlu0 %456
    %v459 = vadd.f32 %v454, %v457
    %v460 = vmax.f32 %v450, %v459
    %v461 = vlaneseq
    %v462 = vshrl.u32 %v461, 7
    %v463 = vsub.s32 6, %v462
    %v464 = vrot.slane %v67, %v463
    %465 = vset.pattern.permute.xlu0 38
    %466 = vperm.xlu0 %465, %v46
    %v467 = vpop.permute.xlu0 %466
    %v469 = vadd.f32 %v464, %v467
    %v470 = vmax.f32 %v460, %v469
    %v471 = vlaneseq
    %v472 = vshrl.u32 %v471, 7
    %v473 = vsub.s32 7, %v472
    %v474 = vrot.slane %v67, %v473
    %475 = vset.pattern.permute.xlu0 39
    %476 = vperm.xlu0 %475, %v46
    %v477 = vpop.permute.xlu0 %476
    %v479 = vadd.f32 %v474, %v477
    %v480 = vmax.f32 %v470, %v479
    %v481 = vlaneseq
    %v482 = vshrl.u32 %v481, 7
    %v483 = vsub.s32 0, %v482
    %v484 = vrot.slane %v68, %v483
    %485 = vset.pattern.permute.xlu0 40
    %486 = vperm.xlu0 %485, %v46
    %v487 = vpop.permute.xlu0 %486
    %v489 = vadd.f32 %v484, %v487
    %v490 = vmax.f32 %v480, %v489
    %v491 = vlaneseq
    %v492 = vshrl.u32 %v491, 7
    %v493 = vsub.s32 1, %v492
    %v494 = vrot.slane %v68, %v493
    %495 = vset.pattern.permute.xlu0 41
    %496 = vperm.xlu0 %495, %v46
    %v497 = vpop.permute.xlu0 %496
    %v499 = vadd.f32 %v494, %v497
    %v500 = vmax.f32 %v490, %v499
    %v501 = vlaneseq
    %v502 = vshrl.u32 %v501, 7
    %v503 = vsub.s32 2, %v502
    %v504 = vrot.slane %v68, %v503
    %505 = vset.pattern.permute.xlu0 42
    %506 = vperm.xlu0 %505, %v46
    %v507 = vpop.permute.xlu0 %506
    %v509 = vadd.f32 %v504, %v507
    %v510 = vmax.f32 %v500, %v509
    %v511 = vlaneseq
    %v512 = vshrl.u32 %v511, 7
    %v513 = vsub.s32 3, %v512
    %v514 = vrot.slane %v68, %v513
    %515 = vset.pattern.permute.xlu0 43
    %516 = vperm.xlu0 %515, %v46
    %v517 = vpop.permute.xlu0 %516
    %v519 = vadd.f32 %v514, %v517
    %v520 = vmax.f32 %v510, %v519
    %v521 = vlaneseq
    %v522 = vshrl.u32 %v521, 7
    %v523 = vsub.s32 4, %v522
    %v524 = vrot.slane %v68, %v523
    %525 = vset.pattern.permute.xlu0 44
    %526 = vperm.xlu0 %525, %v46
    %v527 = vpop.permute.xlu0 %526
    %v529 = vadd.f32 %v524, %v527
    %v530 = vmax.f32 %v520, %v529
    %v531 = vlaneseq
    %v532 = vshrl.u32 %v531, 7
    %v533 = vsub.s32 5, %v532
    %v534 = vrot.slane %v68, %v533
    %535 = vset.pattern.permute.xlu0 45
    %536 = vperm.xlu0 %535, %v46
    %v537 = vpop.permute.xlu0 %536
    %v539 = vadd.f32 %v534, %v537
    %v540 = vmax.f32 %v530, %v539
    %v541 = vlaneseq
    %v542 = vshrl.u32 %v541, 7
    %v543 = vsub.s32 6, %v542
    %v544 = vrot.slane %v68, %v543
    %545 = vset.pattern.permute.xlu0 46
    %546 = vperm.xlu0 %545, %v46
    %v547 = vpop.permute.xlu0 %546
    %v549 = vadd.f32 %v544, %v547
    %v550 = vmax.f32 %v540, %v549
    %v551 = vlaneseq
    %v552 = vshrl.u32 %v551, 7
    %v553 = vsub.s32 7, %v552
    %v554 = vrot.slane %v68, %v553
    %555 = vset.pattern.permute.xlu0 47
    %556 = vperm.xlu0 %555, %v46
    %v557 = vpop.permute.xlu0 %556
    %v559 = vadd.f32 %v554, %v557
    %v560 = vmax.f32 %v550, %v559
    %v561 = vlaneseq
    %v562 = vshrl.u32 %v561, 7
    %v563 = vsub.s32 0, %v562
    %v564 = vrot.slane %v69, %v563
    %565 = vset.pattern.permute.xlu0 48
    %566 = vperm.xlu0 %565, %v46
    %v567 = vpop.permute.xlu0 %566
    %v569 = vadd.f32 %v564, %v567
    %v570 = vmax.f32 %v560, %v569
    %v571 = vlaneseq
    %v572 = vshrl.u32 %v571, 7
    %v573 = vsub.s32 1, %v572
    %v574 = vrot.slane %v69, %v573
    %575 = vset.pattern.permute.xlu0 49
    %576 = vperm.xlu0 %575, %v46
    %v577 = vpop.permute.xlu0 %576
    %v579 = vadd.f32 %v574, %v577
    %v580 = vmax.f32 %v570, %v579
    %v581 = vlaneseq
    %v582 = vshrl.u32 %v581, 7
    %v583 = vsub.s32 2, %v582
    %v584 = vrot.slane %v69, %v583
    %585 = vset.pattern.permute.xlu0 50
    %586 = vperm.xlu0 %585, %v46
    %v587 = vpop.permute.xlu0 %586
    %v589 = vadd.f32 %v584, %v587
    %v590 = vmax.f32 %v580, %v589
    %v591 = vlaneseq
    %v592 = vshrl.u32 %v591, 7
    %v593 = vsub.s32 3, %v592
    %v594 = vrot.slane %v69, %v593
    %595 = vset.pattern.permute.xlu0 51
    %596 = vperm.xlu0 %595, %v46
    %v597 = vpop.permute.xlu0 %596
    %v599 = vadd.f32 %v594, %v597
    %v600 = vmax.f32 %v590, %v599
    %v601 = vlaneseq
    %v602 = vshrl.u32 %v601, 7
    %v603 = vsub.s32 4, %v602
    %v604 = vrot.slane %v69, %v603
    %605 = vset.pattern.permute.xlu0 52
    %606 = vperm.xlu0 %605, %v46
    %v607 = vpop.permute.xlu0 %606
    %v609 = vadd.f32 %v604, %v607
    %v610 = vmax.f32 %v600, %v609
    %v611 = vlaneseq
    %v612 = vshrl.u32 %v611, 7
    %v613 = vsub.s32 5, %v612
    %v614 = vrot.slane %v69, %v613
    %615 = vset.pattern.permute.xlu0 53
    %616 = vperm.xlu0 %615, %v46
    %v617 = vpop.permute.xlu0 %616
    %v619 = vadd.f32 %v614, %v617
    %v620 = vmax.f32 %v610, %v619
    %v621 = vlaneseq
    %v622 = vshrl.u32 %v621, 7
    %v623 = vsub.s32 6, %v622
    %v624 = vrot.slane %v69, %v623
    %625 = vset.pattern.permute.xlu0 54
    %626 = vperm.xlu0 %625, %v46
    %v627 = vpop.permute.xlu0 %626
    %v629 = vadd.f32 %v624, %v627
    %v630 = vmax.f32 %v620, %v629
    %v631 = vlaneseq
    %v632 = vshrl.u32 %v631, 7
    %v633 = vsub.s32 7, %v632
    %v634 = vrot.slane %v69, %v633
    %635 = vset.pattern.permute.xlu0 55
    %636 = vperm.xlu0 %635, %v46
    %v637 = vpop.permute.xlu0 %636
    %v639 = vadd.f32 %v634, %v637
    %v640 = vmax.f32 %v630, %v639
    %v641 = vlaneseq
    %v642 = vshrl.u32 %v641, 7
    %v643 = vsub.s32 0, %v642
    %v644 = vrot.slane %v70, %v643
    %645 = vset.pattern.permute.xlu0 56
    %646 = vperm.xlu0 %645, %v46
    %v647 = vpop.permute.xlu0 %646
    %v649 = vadd.f32 %v644, %v647
    %v650 = vmax.f32 %v640, %v649
    %v651 = vlaneseq
    %v652 = vshrl.u32 %v651, 7
    %v653 = vsub.s32 1, %v652
    %v654 = vrot.slane %v70, %v653
    %655 = vset.pattern.permute.xlu0 57
    %656 = vperm.xlu0 %655, %v46
    %v657 = vpop.permute.xlu0 %656
    %v659 = vadd.f32 %v654, %v657
    %v660 = vmax.f32 %v650, %v659
    %v661 = vlaneseq
    %v662 = vshrl.u32 %v661, 7
    %v663 = vsub.s32 2, %v662
    %v664 = vrot.slane %v70, %v663
    %665 = vset.pattern.permute.xlu0 58
    %666 = vperm.xlu0 %665, %v46
    %v667 = vpop.permute.xlu0 %666
    %v669 = vadd.f32 %v664, %v667
    %v670 = vmax.f32 %v660, %v669
    %v671 = vlaneseq
    %v672 = vshrl.u32 %v671, 7
    %v673 = vsub.s32 3, %v672
    %v674 = vrot.slane %v70, %v673
    %675 = vset.pattern.permute.xlu0 59
    %676 = vperm.xlu0 %675, %v46
    %v677 = vpop.permute.xlu0 %676
    %v679 = vadd.f32 %v674, %v677
    %v680 = vmax.f32 %v670, %v679
    %v681 = vlaneseq
    %v682 = vshrl.u32 %v681, 7
    %v683 = vsub.s32 4, %v682
    %v684 = vrot.slane %v70, %v683
    %685 = vset.pattern.permute.xlu0 60
    %686 = vperm.xlu0 %685, %v46
    %v687 = vpop.permute.xlu0 %686
    %v689 = vadd.f32 %v684, %v687
    %v690 = vmax.f32 %v680, %v689
    %v691 = vlaneseq
    %v692 = vshrl.u32 %v691, 7
    %v693 = vsub.s32 5, %v692
    %v694 = vrot.slane %v70, %v693
    %695 = vset.pattern.permute.xlu0 61
    %696 = vperm.xlu0 %695, %v46
    %v697 = vpop.permute.xlu0 %696
    %v699 = vadd.f32 %v694, %v697
    %v700 = vmax.f32 %v690, %v699
    %v701 = vlaneseq
    %v702 = vshrl.u32 %v701, 7
    %v703 = vsub.s32 6, %v702
    %v704 = vrot.slane %v70, %v703
    %705 = vset.pattern.permute.xlu0 62
    %706 = vperm.xlu0 %705, %v46
    %v707 = vpop.permute.xlu0 %706
    %v709 = vadd.f32 %v704, %v707
    %v710 = vmax.f32 %v700, %v709
    %v711 = vlaneseq
    %v712 = vshrl.u32 %v711, 7
    %v713 = vsub.s32 7, %v712
    %v714 = vrot.slane %v70, %v713
    %715 = vset.pattern.permute.xlu0 63
    %716 = vperm.xlu0 %715, %v46
    %v717 = vpop.permute.xlu0 %716
    %v719 = vadd.f32 %v714, %v717
    %v720 = vmax.f32 %v710, %v719
    %v721 = vlaneseq
    %v722 = vshrl.u32 %v721, 7
    %v723 = vsub.s32 0, %v722
    %v724 = vrot.slane %v71, %v723
    %725 = vset.pattern.permute.xlu0 64
    %726 = vperm.xlu0 %725, %v46
    %v727 = vpop.permute.xlu0 %726
    %v729 = vadd.f32 %v724, %v727
    %v730 = vmax.f32 %v720, %v729
    %v731 = vlaneseq
    %v732 = vshrl.u32 %v731, 7
    %v733 = vsub.s32 1, %v732
    %v734 = vrot.slane %v71, %v733
    %735 = vset.pattern.permute.xlu0 65
    %736 = vperm.xlu0 %735, %v46
    %v737 = vpop.permute.xlu0 %736
    %v739 = vadd.f32 %v734, %v737
    %v740 = vmax.f32 %v730, %v739
    %v741 = vlaneseq
    %v742 = vshrl.u32 %v741, 7
    %v743 = vsub.s32 2, %v742
    %v744 = vrot.slane %v71, %v743
    %745 = vset.pattern.permute.xlu0 66
    %746 = vperm.xlu0 %745, %v46
    %v747 = vpop.permute.xlu0 %746
    %v749 = vadd.f32 %v744, %v747
    %v750 = vmax.f32 %v740, %v749
    %v751 = vlaneseq
    %v752 = vshrl.u32 %v751, 7
    %v753 = vsub.s32 3, %v752
    %v754 = vrot.slane %v71, %v753
    %755 = vset.pattern.permute.xlu0 67
    %756 = vperm.xlu0 %755, %v46
    %v757 = vpop.permute.xlu0 %756
    %v759 = vadd.f32 %v754, %v757
    %v760 = vmax.f32 %v750, %v759
    %v761 = vlaneseq
    %v762 = vshrl.u32 %v761, 7
    %v763 = vsub.s32 4, %v762
    %v764 = vrot.slane %v71, %v763
    %765 = vset.pattern.permute.xlu0 68
    %766 = vperm.xlu0 %765, %v46
    %v767 = vpop.permute.xlu0 %766
    %v769 = vadd.f32 %v764, %v767
    %v770 = vmax.f32 %v760, %v769
    %v771 = vlaneseq
    %v772 = vshrl.u32 %v771, 7
    %v773 = vsub.s32 5, %v772
    %v774 = vrot.slane %v71, %v773
    %775 = vset.pattern.permute.xlu0 69
    %776 = vperm.xlu0 %775, %v46
    %v777 = vpop.permute.xlu0 %776
    %v779 = vadd.f32 %v774, %v777
    %v780 = vmax.f32 %v770, %v779
    %v781 = vlaneseq
    %v782 = vshrl.u32 %v781, 7
    %v783 = vsub.s32 6, %v782
    %v784 = vrot.slane %v71, %v783
    %785 = vset.pattern.permute.xlu0 70
    %786 = vperm.xlu0 %785, %v46
    %v787 = vpop.permute.xlu0 %786
    %v789 = vadd.f32 %v784, %v787
    %v790 = vmax.f32 %v780, %v789
    %v791 = vlaneseq
    %v792 = vshrl.u32 %v791, 7
    %v793 = vsub.s32 7, %v792
    %v794 = vrot.slane %v71, %v793
    %795 = vset.pattern.permute.xlu0 71
    %796 = vperm.xlu0 %795, %v46
    %v797 = vpop.permute.xlu0 %796
    %v799 = vadd.f32 %v794, %v797
    %v800 = vmax.f32 %v790, %v799
    %v801 = vlaneseq
    %v802 = vshrl.u32 %v801, 7
    %v803 = vsub.s32 0, %v802
    %v804 = vrot.slane %v72, %v803
    %805 = vset.pattern.permute.xlu0 72
    %806 = vperm.xlu0 %805, %v46
    %v807 = vpop.permute.xlu0 %806
    %v809 = vadd.f32 %v804, %v807
    %v810 = vmax.f32 %v800, %v809
    %v811 = vlaneseq
    %v812 = vshrl.u32 %v811, 7
    %v813 = vsub.s32 1, %v812
    %v814 = vrot.slane %v72, %v813
    %815 = vset.pattern.permute.xlu0 73
    %816 = vperm.xlu0 %815, %v46
    %v817 = vpop.permute.xlu0 %816
    %v819 = vadd.f32 %v814, %v817
    %v820 = vmax.f32 %v810, %v819
    %v821 = vlaneseq
    %v822 = vshrl.u32 %v821, 7
    %v823 = vsub.s32 2, %v822
    %v824 = vrot.slane %v72, %v823
    %825 = vset.pattern.permute.xlu0 74
    %826 = vperm.xlu0 %825, %v46
    %v827 = vpop.permute.xlu0 %826
    %v829 = vadd.f32 %v824, %v827
    %v830 = vmax.f32 %v820, %v829
    %v831 = vlaneseq
    %v832 = vshrl.u32 %v831, 7
    %v833 = vsub.s32 3, %v832
    %v834 = vrot.slane %v72, %v833
    %835 = vset.pattern.permute.xlu0 75
    %836 = vperm.xlu0 %835, %v46
    %v837 = vpop.permute.xlu0 %836
    %v839 = vadd.f32 %v834, %v837
    %v840 = vmax.f32 %v830, %v839
    %v841 = vlaneseq
    %v842 = vshrl.u32 %v841, 7
    %v843 = vsub.s32 4, %v842
    %v844 = vrot.slane %v72, %v843
    %845 = vset.pattern.permute.xlu0 76
    %846 = vperm.xlu0 %845, %v46
    %v847 = vpop.permute.xlu0 %846
    %v849 = vadd.f32 %v844, %v847
    %v850 = vmax.f32 %v840, %v849
    %v851 = vlaneseq
    %v852 = vshrl.u32 %v851, 7
    %v853 = vsub.s32 5, %v852
    %v854 = vrot.slane %v72, %v853
    %855 = vset.pattern.permute.xlu0 77
    %856 = vperm.xlu0 %855, %v46
    %v857 = vpop.permute.xlu0 %856
    %v859 = vadd.f32 %v854, %v857
    %v860 = vmax.f32 %v850, %v859
    %v861 = vlaneseq
    %v862 = vshrl.u32 %v861, 7
    %v863 = vsub.s32 6, %v862
    %v864 = vrot.slane %v72, %v863
    %865 = vset.pattern.permute.xlu0 78
    %866 = vperm.xlu0 %865, %v46
    %v867 = vpop.permute.xlu0 %866
    %v869 = vadd.f32 %v864, %v867
    %v870 = vmax.f32 %v860, %v869
    %v871 = vlaneseq
    %v872 = vshrl.u32 %v871, 7
    %v873 = vsub.s32 7, %v872
    %v874 = vrot.slane %v72, %v873
    %875 = vset.pattern.permute.xlu0 79
    %876 = vperm.xlu0 %875, %v46
    %v877 = vpop.permute.xlu0 %876
    %v879 = vadd.f32 %v874, %v877
    %v880 = vmax.f32 %v870, %v879
    %v881 = vlaneseq
    %v882 = vshrl.u32 %v881, 7
    %v883 = vsub.s32 0, %v882
    %v884 = vrot.slane %v73, %v883
    %885 = vset.pattern.permute.xlu0 80
    %886 = vperm.xlu0 %885, %v46
    %v887 = vpop.permute.xlu0 %886
    %v889 = vadd.f32 %v884, %v887
    %v890 = vmax.f32 %v880, %v889
    %v891 = vlaneseq
    %v892 = vshrl.u32 %v891, 7
    %v893 = vsub.s32 1, %v892
    %v894 = vrot.slane %v73, %v893
    %895 = vset.pattern.permute.xlu0 81
    %896 = vperm.xlu0 %895, %v46
    %v897 = vpop.permute.xlu0 %896
    %v899 = vadd.f32 %v894, %v897
    %v900 = vmax.f32 %v890, %v899
    %v901 = vlaneseq
    %v902 = vshrl.u32 %v901, 7
    %v903 = vsub.s32 2, %v902
    %v904 = vrot.slane %v73, %v903
    %905 = vset.pattern.permute.xlu0 82
    %906 = vperm.xlu0 %905, %v46
    %v907 = vpop.permute.xlu0 %906
    %v909 = vadd.f32 %v904, %v907
    %v910 = vmax.f32 %v900, %v909
    %v911 = vlaneseq
    %v912 = vshrl.u32 %v911, 7
    %v913 = vsub.s32 3, %v912
    %v914 = vrot.slane %v73, %v913
    %915 = vset.pattern.permute.xlu0 83
    %916 = vperm.xlu0 %915, %v46
    %v917 = vpop.permute.xlu0 %916
    %v919 = vadd.f32 %v914, %v917
    %v920 = vmax.f32 %v910, %v919
    %v921 = vlaneseq
    %v922 = vshrl.u32 %v921, 7
    %v923 = vsub.s32 4, %v922
    %v924 = vrot.slane %v73, %v923
    %925 = vset.pattern.permute.xlu0 84
    %926 = vperm.xlu0 %925, %v46
    %v927 = vpop.permute.xlu0 %926
    %v929 = vadd.f32 %v924, %v927
    %v930 = vmax.f32 %v920, %v929
    %v931 = vlaneseq
    %v932 = vshrl.u32 %v931, 7
    %v933 = vsub.s32 5, %v932
    %v934 = vrot.slane %v73, %v933
    %935 = vset.pattern.permute.xlu0 85
    %936 = vperm.xlu0 %935, %v46
    %v937 = vpop.permute.xlu0 %936
    %v939 = vadd.f32 %v934, %v937
    %v940 = vmax.f32 %v930, %v939
    %v941 = vlaneseq
    %v942 = vshrl.u32 %v941, 7
    %v943 = vsub.s32 6, %v942
    %v944 = vrot.slane %v73, %v943
    %945 = vset.pattern.permute.xlu0 86
    %946 = vperm.xlu0 %945, %v46
    %v947 = vpop.permute.xlu0 %946
    %v949 = vadd.f32 %v944, %v947
    %v950 = vmax.f32 %v940, %v949
    %v951 = vlaneseq
    %v952 = vshrl.u32 %v951, 7
    %v953 = vsub.s32 7, %v952
    %v954 = vrot.slane %v73, %v953
    %955 = vset.pattern.permute.xlu0 87
    %956 = vperm.xlu0 %955, %v46
    %v957 = vpop.permute.xlu0 %956
    %v959 = vadd.f32 %v954, %v957
    %v960 = vmax.f32 %v950, %v959
    %v961 = vlaneseq
    %v962 = vshrl.u32 %v961, 7
    %v963 = vsub.s32 0, %v962
    %v964 = vrot.slane %v74, %v963
    %965 = vset.pattern.permute.xlu0 88
    %966 = vperm.xlu0 %965, %v46
    %v967 = vpop.permute.xlu0 %966
    %v969 = vadd.f32 %v964, %v967
    %v970 = vmax.f32 %v960, %v969
    %v971 = vlaneseq
    %v972 = vshrl.u32 %v971, 7
    %v973 = vsub.s32 1, %v972
    %v974 = vrot.slane %v74, %v973
    %975 = vset.pattern.permute.xlu0 89
    %976 = vperm.xlu0 %975, %v46
    %v977 = vpop.permute.xlu0 %976
    %v979 = vadd.f32 %v974, %v977
    %v980 = vmax.f32 %v970, %v979
    %v981 = vlaneseq
    %v982 = vshrl.u32 %v981, 7
    %v983 = vsub.s32 2, %v982
    %v984 = vrot.slane %v74, %v983
    %985 = vset.pattern.permute.xlu0 90
    %986 = vperm.xlu0 %985, %v46
    %v987 = vpop.permute.xlu0 %986
    %v989 = vadd.f32 %v984, %v987
    %v990 = vmax.f32 %v980, %v989
    %v991 = vlaneseq
    %v992 = vshrl.u32 %v991, 7
    %v993 = vsub.s32 3, %v992
    %v994 = vrot.slane %v74, %v993
    %995 = vset.pattern.permute.xlu0 91
    %996 = vperm.xlu0 %995, %v46
    %v997 = vpop.permute.xlu0 %996
    %v999 = vadd.f32 %v994, %v997
    %v1000 = vmax.f32 %v990, %v999
    %v1001 = vlaneseq
    %v1002 = vshrl.u32 %v1001, 7
    %v1003 = vsub.s32 4, %v1002
    %v1004 = vrot.slane %v74, %v1003
    %1005 = vset.pattern.permute.xlu0 92
    %1006 = vperm.xlu0 %1005, %v46
    %v1007 = vpop.permute.xlu0 %1006
    %v1009 = vadd.f32 %v1004, %v1007
    %v1010 = vmax.f32 %v1000, %v1009
    %v1011 = vlaneseq
    %v1012 = vshrl.u32 %v1011, 7
    %v1013 = vsub.s32 5, %v1012
    %v1014 = vrot.slane %v74, %v1013
    %1015 = vset.pattern.permute.xlu0 93
    %1016 = vperm.xlu0 %1015, %v46
    %v1017 = vpop.permute.xlu0 %1016
    %v1019 = vadd.f32 %v1014, %v1017
    %v1020 = vmax.f32 %v1010, %v1019
    %v1021 = vlaneseq
    %v1022 = vshrl.u32 %v1021, 7
    %v1023 = vsub.s32 6, %v1022
    %v1024 = vrot.slane %v74, %v1023
    %1025 = vset.pattern.permute.xlu0 94
    %1026 = vperm.xlu0 %1025, %v46
    %v1027 = vpop.permute.xlu0 %1026
    %v1029 = vadd.f32 %v1024, %v1027
    %v1030 = vmax.f32 %v1020, %v1029
    %v1031 = vlaneseq
    %v1032 = vshrl.u32 %v1031, 7
    %v1033 = vsub.s32 7, %v1032
    %v1034 = vrot.slane %v74, %v1033
    %1035 = vset.pattern.permute.xlu0 95
    %1036 = vperm.xlu0 %1035, %v46
    %v1037 = vpop.permute.xlu0 %1036
    %v1039 = vadd.f32 %v1034, %v1037
    %v1040 = vmax.f32 %v1030, %v1039
    %v1041 = vlaneseq
    %v1042 = vshrl.u32 %v1041, 7
    %v1043 = vsub.s32 0, %v1042
    %v1044 = vrot.slane %v75, %v1043
    %1045 = vset.pattern.permute.xlu0 96
    %1046 = vperm.xlu0 %1045, %v46
    %v1047 = vpop.permute.xlu0 %1046
    %v1049 = vadd.f32 %v1044, %v1047
    %v1050 = vmax.f32 %v1040, %v1049
    %v1051 = vlaneseq
    %v1052 = vshrl.u32 %v1051, 7
    %v1053 = vsub.s32 1, %v1052
    %v1054 = vrot.slane %v75, %v1053
    %1055 = vset.pattern.permute.xlu0 97
    %1056 = vperm.xlu0 %1055, %v46
    %v1057 = vpop.permute.xlu0 %1056
    %v1059 = vadd.f32 %v1054, %v1057
    %v1060 = vmax.f32 %v1050, %v1059
    %v1061 = vlaneseq
    %v1062 = vshrl.u32 %v1061, 7
    %v1063 = vsub.s32 2, %v1062
    %v1064 = vrot.slane %v75, %v1063
    %1065 = vset.pattern.permute.xlu0 98
    %1066 = vperm.xlu0 %1065, %v46
    %v1067 = vpop.permute.xlu0 %1066
    %v1069 = vadd.f32 %v1064, %v1067
    %v1070 = vmax.f32 %v1060, %v1069
    %v1071 = vlaneseq
    %v1072 = vshrl.u32 %v1071, 7
    %v1073 = vsub.s32 3, %v1072
    %v1074 = vrot.slane %v75, %v1073
    %1075 = vset.pattern.permute.xlu0 99
    %1076 = vperm.xlu0 %1075, %v46
    %v1077 = vpop.permute.xlu0 %1076
    %v1079 = vadd.f32 %v1074, %v1077
    %v1080 = vmax.f32 %v1070, %v1079
    %v1081 = vlaneseq
    %v1082 = vshrl.u32 %v1081, 7
    %v1083 = vsub.s32 4, %v1082
    %v1084 = vrot.slane %v75, %v1083
    %1085 = vset.pattern.permute.xlu0 100
    %1086 = vperm.xlu0 %1085, %v46
    %v1087 = vpop.permute.xlu0 %1086
    %v1089 = vadd.f32 %v1084, %v1087
    %v1090 = vmax.f32 %v1080, %v1089
    %v1091 = vlaneseq
    %v1092 = vshrl.u32 %v1091, 7
    %v1093 = vsub.s32 5, %v1092
    %v1094 = vrot.slane %v75, %v1093
    %1095 = vset.pattern.permute.xlu0 101
    %1096 = vperm.xlu0 %1095, %v46
    %v1097 = vpop.permute.xlu0 %1096
    %v1099 = vadd.f32 %v1094, %v1097
    %v1100 = vmax.f32 %v1090, %v1099
    %v1101 = vlaneseq
    %v1102 = vshrl.u32 %v1101, 7
    %v1103 = vsub.s32 6, %v1102
    %v1104 = vrot.slane %v75, %v1103
    %1105 = vset.pattern.permute.xlu0 102
    %1106 = vperm.xlu0 %1105, %v46
    %v1107 = vpop.permute.xlu0 %1106
    %v1109 = vadd.f32 %v1104, %v1107
    %v1110 = vmax.f32 %v1100, %v1109
    %v1111 = vlaneseq
    %v1112 = vshrl.u32 %v1111, 7
    %v1113 = vsub.s32 7, %v1112
    %v1114 = vrot.slane %v75, %v1113
    %1115 = vset.pattern.permute.xlu0 103
    %1116 = vperm.xlu0 %1115, %v46
    %v1117 = vpop.permute.xlu0 %1116
    %v1119 = vadd.f32 %v1114, %v1117
    %v1120 = vmax.f32 %v1110, %v1119
    %v1121 = vlaneseq
    %v1122 = vshrl.u32 %v1121, 7
    %v1123 = vsub.s32 0, %v1122
    %v1124 = vrot.slane %v76, %v1123
    %1125 = vset.pattern.permute.xlu0 104
    %1126 = vperm.xlu0 %1125, %v46
    %v1127 = vpop.permute.xlu0 %1126
    %v1129 = vadd.f32 %v1124, %v1127
    %v1130 = vmax.f32 %v1120, %v1129
    %v1131 = vlaneseq
    %v1132 = vshrl.u32 %v1131, 7
    %v1133 = vsub.s32 1, %v1132
    %v1134 = vrot.slane %v76, %v1133
    %1135 = vset.pattern.permute.xlu0 105
    %1136 = vperm.xlu0 %1135, %v46
    %v1137 = vpop.permute.xlu0 %1136
    %v1139 = vadd.f32 %v1134, %v1137
    %v1140 = vmax.f32 %v1130, %v1139
    %v1141 = vlaneseq
    %v1142 = vshrl.u32 %v1141, 7
    %v1143 = vsub.s32 2, %v1142
    %v1144 = vrot.slane %v76, %v1143
    %1145 = vset.pattern.permute.xlu0 106
    %1146 = vperm.xlu0 %1145, %v46
    %v1147 = vpop.permute.xlu0 %1146
    %v1149 = vadd.f32 %v1144, %v1147
    %v1150 = vmax.f32 %v1140, %v1149
    %v1151 = vlaneseq
    %v1152 = vshrl.u32 %v1151, 7
    %v1153 = vsub.s32 3, %v1152
    %v1154 = vrot.slane %v76, %v1153
    %1155 = vset.pattern.permute.xlu0 107
    %1156 = vperm.xlu0 %1155, %v46
    %v1157 = vpop.permute.xlu0 %1156
    %v1159 = vadd.f32 %v1154, %v1157
    %v1160 = vmax.f32 %v1150, %v1159
    %v1161 = vlaneseq
    %v1162 = vshrl.u32 %v1161, 7
    %v1163 = vsub.s32 4, %v1162
    %v1164 = vrot.slane %v76, %v1163
    %1165 = vset.pattern.permute.xlu0 108
    %1166 = vperm.xlu0 %1165, %v46
    %v1167 = vpop.permute.xlu0 %1166
    %v1169 = vadd.f32 %v1164, %v1167
    %v1170 = vmax.f32 %v1160, %v1169
    %v1171 = vlaneseq
    %v1172 = vshrl.u32 %v1171, 7
    %v1173 = vsub.s32 5, %v1172
    %v1174 = vrot.slane %v76, %v1173
    %1175 = vset.pattern.permute.xlu0 109
    %1176 = vperm.xlu0 %1175, %v46
    %v1177 = vpop.permute.xlu0 %1176
    %v1179 = vadd.f32 %v1174, %v1177
    %v1180 = vmax.f32 %v1170, %v1179
    %v1181 = vlaneseq
    %v1182 = vshrl.u32 %v1181, 7
    %v1183 = vsub.s32 6, %v1182
    %v1184 = vrot.slane %v76, %v1183
    %1185 = vset.pattern.permute.xlu0 110
    %1186 = vperm.xlu0 %1185, %v46
    %v1187 = vpop.permute.xlu0 %1186
    %v1189 = vadd.f32 %v1184, %v1187
    %v1190 = vmax.f32 %v1180, %v1189
    %v1191 = vlaneseq
    %v1192 = vshrl.u32 %v1191, 7
    %v1193 = vsub.s32 7, %v1192
    %v1194 = vrot.slane %v76, %v1193
    %1195 = vset.pattern.permute.xlu0 111
    %1196 = vperm.xlu0 %1195, %v46
    %v1197 = vpop.permute.xlu0 %1196
    %v1199 = vadd.f32 %v1194, %v1197
    %v1200 = vmax.f32 %v1190, %v1199
    %v1201 = vlaneseq
    %v1202 = vshrl.u32 %v1201, 7
    %v1203 = vsub.s32 0, %v1202
    %v1204 = vrot.slane %v77, %v1203
    %1205 = vset.pattern.permute.xlu0 112
    %1206 = vperm.xlu0 %1205, %v46
    %v1207 = vpop.permute.xlu0 %1206
    %v1209 = vadd.f32 %v1204, %v1207
    %v1210 = vmax.f32 %v1200, %v1209
    %v1211 = vlaneseq
    %v1212 = vshrl.u32 %v1211, 7
    %v1213 = vsub.s32 1, %v1212
    %v1214 = vrot.slane %v77, %v1213
    %1215 = vset.pattern.permute.xlu0 113
    %1216 = vperm.xlu0 %1215, %v46
    %v1217 = vpop.permute.xlu0 %1216
    %v1219 = vadd.f32 %v1214, %v1217
    %v1220 = vmax.f32 %v1210, %v1219
    %v1221 = vlaneseq
    %v1222 = vshrl.u32 %v1221, 7
    %v1223 = vsub.s32 2, %v1222
    %v1224 = vrot.slane %v77, %v1223
    %1225 = vset.pattern.permute.xlu0 114
    %1226 = vperm.xlu0 %1225, %v46
    %v1227 = vpop.permute.xlu0 %1226
    %v1229 = vadd.f32 %v1224, %v1227
    %v1230 = vmax.f32 %v1220, %v1229
    %v1231 = vlaneseq
    %v1232 = vshrl.u32 %v1231, 7
    %v1233 = vsub.s32 3, %v1232
    %v1234 = vrot.slane %v77, %v1233
    %1235 = vset.pattern.permute.xlu0 115
    %1236 = vperm.xlu0 %1235, %v46
    %v1237 = vpop.permute.xlu0 %1236
    %v1239 = vadd.f32 %v1234, %v1237
    %v1240 = vmax.f32 %v1230, %v1239
    %v1241 = vlaneseq
    %v1242 = vshrl.u32 %v1241, 7
    %v1243 = vsub.s32 4, %v1242
    %v1244 = vrot.slane %v77, %v1243
    %1245 = vset.pattern.permute.xlu0 116
    %1246 = vperm.xlu0 %1245, %v46
    %v1247 = vpop.permute.xlu0 %1246
    %v1249 = vadd.f32 %v1244, %v1247
    %v1250 = vmax.f32 %v1240, %v1249
    %v1251 = vlaneseq
    %v1252 = vshrl.u32 %v1251, 7
    %v1253 = vsub.s32 5, %v1252
    %v1254 = vrot.slane %v77, %v1253
    %1255 = vset.pattern.permute.xlu0 117
    %1256 = vperm.xlu0 %1255, %v46
    %v1257 = vpop.permute.xlu0 %1256
    %v1259 = vadd.f32 %v1254, %v1257
    %v1260 = vmax.f32 %v1250, %v1259
    %v1261 = vlaneseq
    %v1262 = vshrl.u32 %v1261, 7
    %v1263 = vsub.s32 6, %v1262
    %v1264 = vrot.slane %v77, %v1263
    %1265 = vset.pattern.permute.xlu0 118
    %1266 = vperm.xlu0 %1265, %v46
    %v1267 = vpop.permute.xlu0 %1266
    %v1269 = vadd.f32 %v1264, %v1267
    %v1270 = vmax.f32 %v1260, %v1269
    %v1271 = vlaneseq
    %v1272 = vshrl.u32 %v1271, 7
    %v1273 = vsub.s32 7, %v1272
    %v1274 = vrot.slane %v77, %v1273
    %1275 = vset.pattern.permute.xlu0 119
    %1276 = vperm.xlu0 %1275, %v46
    %v1277 = vpop.permute.xlu0 %1276
    %v1279 = vadd.f32 %v1274, %v1277
    %v1280 = vmax.f32 %v1270, %v1279
    %v1281 = vlaneseq
    %v1282 = vshrl.u32 %v1281, 7
    %v1283 = vsub.s32 0, %v1282
    %v1284 = vrot.slane %v78, %v1283
    %1285 = vset.pattern.permute.xlu0 120
    %1286 = vperm.xlu0 %1285, %v46
    %v1287 = vpop.permute.xlu0 %1286
    %v1289 = vadd.f32 %v1284, %v1287
    %v1290 = vmax.f32 %v1280, %v1289
    %v1291 = vlaneseq
    %v1292 = vshrl.u32 %v1291, 7
    %v1293 = vsub.s32 1, %v1292
    %v1294 = vrot.slane %v78, %v1293
    %1295 = vset.pattern.permute.xlu0 121
    %1296 = vperm.xlu0 %1295, %v46
    %v1297 = vpop.permute.xlu0 %1296
    %v1299 = vadd.f32 %v1294, %v1297
    %v1300 = vmax.f32 %v1290, %v1299
    %v1301 = vlaneseq
    %v1302 = vshrl.u32 %v1301, 7
    %v1303 = vsub.s32 2, %v1302
    %v1304 = vrot.slane %v78, %v1303
    %1305 = vset.pattern.permute.xlu0 122
    %1306 = vperm.xlu0 %1305, %v46
    %v1307 = vpop.permute.xlu0 %1306
    %v1309 = vadd.f32 %v1304, %v1307
    %v1310 = vmax.f32 %v1300, %v1309
    %v1311 = vlaneseq
    %v1312 = vshrl.u32 %v1311, 7
    %v1313 = vsub.s32 3, %v1312
    %v1314 = vrot.slane %v78, %v1313
    %1315 = vset.pattern.permute.xlu0 123
    %1316 = vperm.xlu0 %1315, %v46
    %v1317 = vpop.permute.xlu0 %1316
    %v1319 = vadd.f32 %v1314, %v1317
    %v1320 = vmax.f32 %v1310, %v1319
    %v1321 = vlaneseq
    %v1322 = vshrl.u32 %v1321, 7
    %v1323 = vsub.s32 4, %v1322
    %v1324 = vrot.slane %v78, %v1323
    %1325 = vset.pattern.permute.xlu0 124
    %1326 = vperm.xlu0 %1325, %v46
    %v1327 = vpop.permute.xlu0 %1326
    %v1329 = vadd.f32 %v1324, %v1327
    %v1330 = vmax.f32 %v1320, %v1329
    %v1331 = vlaneseq
    %v1332 = vshrl.u32 %v1331, 7
    %v1333 = vsub.s32 5, %v1332
    %v1334 = vrot.slane %v78, %v1333
    %1335 = vset.pattern.permute.xlu0 125
    %1336 = vperm.xlu0 %1335, %v46
    %v1337 = vpop.permute.xlu0 %1336
    %v1339 = vadd.f32 %v1334, %v1337
    %v1340 = vmax.f32 %v1330, %v1339
    %v1341 = vlaneseq
    %v1342 = vshrl.u32 %v1341, 7
    %v1343 = vsub.s32 6, %v1342
    %v1344 = vrot.slane %v78, %v1343
    %1345 = vset.pattern.permute.xlu0 126
    %1346 = vperm.xlu0 %1345, %v46
    %v1347 = vpop.permute.xlu0 %1346
    %v1349 = vadd.f32 %v1344, %v1347
    %v1350 = vmax.f32 %v1340, %v1349
    %v1351 = vlaneseq
    %v1352 = vshrl.u32 %v1351, 7
    %v1353 = vsub.s32 7, %v1352
    %v1354 = vrot.slane %v78, %v1353
    %1355 = vset.pattern.permute.xlu0 127
    %1356 = vperm.xlu0 %1355, %v46
    %v1357 = vpop.permute.xlu0 %1356
    %v1359 = vadd.f32 %v1354, %v1357
    %v1360 = vmax.f32 %v1350, %v1359
    %1361 = vst [vmem:[#allocation2] sm:$0xff] %v1360
    // Predicated region
    $region22: #{tpu_custom_call.1} parent=1 // pred_check
      %p1362 = pneg %p38
    $region23: #{tpu_custom_call.1} parent=1 // pred_check_branch
      %1364 = sbr.rel (%p1362) target = $region25
    $region24: #{tpu_custom_call.1} parent=1 // pred_region
      %v1365 = vld [vmem:[#allocation2] sm:$0xff]
      %vm1366 = vcmp.gt.f32.partialorder %v1365, -1e+30
      %v1367 = vsel %vm1366, %v1365, 0.0
      %1368 = vst [vmem:[#allocation8] sm:$0xff] %v1367
    $region25: #{tpu_custom_call.1} parent=1 // pred_fallthru
      _
    // Predicated region
    $region26: #{tpu_custom_call.1} parent=1 // pred_check
      _
    $region27: #{tpu_custom_call.1} parent=1 // pred_check_branch
      %1370 = sbr.rel (0) target = $region29
    $region28: #{tpu_custom_call.1} parent=1 // pred_region
      %s1372 = ssub.s32 128, 128
      %1373 = vsyncadd [#allocation5], %s1372
      %s1375 = sshll.u32 [#allocation8], 4
      %s1376 = int_to_ptr.vmem [resolvable:$true] %s1375
      %1378 = dma.vmem_to_hbm [thread:$0]  %s1376, 128, %s2, [#allocation5]
    $region29: #{tpu_custom_call.1} parent=1 // pred_fallthru
      _
    // Predicated region
    $region30: #{tpu_custom_call.1} parent=1 // pred_check
      _
    $region31: #{tpu_custom_call.1} parent=1 // pred_check_branch
      %1380 = sbr.rel (0) target = $region33
    $region32: #{tpu_custom_call.1} parent=1 // pred_region
      %1381 = dma.done [#allocation5], 128
    $region33: #{tpu_custom_call.1} parent=1 // pred_fallthru
      _
    %1382 = vsyncpa [#allocation4], 1
    %1383 = vsyncpa [#allocation7], 1
    %1384 = vsyncpa [#allocation5], 1

</llo_original>
